<compile_context>
chip_gen: v5e
topology: v5e:2x2
jax: 0.10.0
libtpu: 0.0.40
codegen_flags: <defaults>
</compile_context>

<pallas_src>
import functools
import math

import jax
import jax.numpy as jnp
from jax.experimental import pallas as pl
from jax.experimental.pallas import tpu as pltpu


def _self_attention_kernel(x_ref, bits_ref, o_ref, *, d_model):
    # x_ref: (bb, N, Dp) input tile, bits_ref: (bb, N, N) int32, o_ref: (bb, N, Dp)
    x = x_ref[...].astype(jnp.float32)
    scale = 1.0 / math.sqrt(d_model)

    # Fold 1/sqrt(d) into Q; bf16 operands at the MXU boundary, f32 accumulation.
    q = (x * scale).astype(jnp.bfloat16)
    kv = x.astype(jnp.bfloat16)

    # scores = Q @ K^T : contraction on the channel axis, no explicit transpose.
    scores = jnp.einsum("bnd,bmd->bnm", q, kv, preferred_element_type=jnp.float32)

    # Numerically stable softmax numerator (f32 epilogue).
    m = jnp.max(scores, axis=-1, keepdims=True)
    e = jnp.exp(scores - m)
    row_sum = jnp.sum(e, axis=-1, keepdims=True)  # >= 1 (includes the max element)

    # Dropout(p=0.5): mask the *unnormalized* exp. Keep iff the sign bit of the
    # random word is 0 (uint32 word < 2^31), i.e. p_keep = 0.5.
    keep = bits_ref[...] >= 0
    e_masked = jnp.where(keep, e, 0.0).astype(jnp.bfloat16)

    # out_unnorm = masked_e @ V (bf16 MXU, f32 accumulation).
    out = jnp.einsum("bnm,bmd->bnd", e_masked, kv, preferred_element_type=jnp.float32)

    # Fold softmax normalization and the dropout 1/(1-p)=2 into one (N, Dp)
    # multiply; the reciprocal runs on the otherwise-idle EUP slot.
    inv = pl.reciprocal(row_sum, approx=True)
    o_ref[...] = (out * (2.0 * inv)).astype(o_ref.dtype)


def _dropout_bits(seed, batch, n_tokens):
    """Random int32 words; keep an attention weight iff word >= 0 (p_keep=0.5)."""
    # TODO(synk): deterministic per seed but not bitwise identical to torch's RNG.
    key = jax.random.PRNGKey(seed)
    bits = jax.random.bits(key, (batch, n_tokens, n_tokens), dtype=jnp.uint32)
    return jax.lax.bitcast_convert_type(bits, jnp.int32)


def _pick_batch_block(batch):
    # Largest divisor of `batch` that is <= 8, preferring >= 2 grid steps so the
    # parallel batch axis can shard across v7x's two TensorCores.
    if batch == 1:
        return 1
    for cand in range(min(batch // 2, 8), 0, -1):
        if batch % cand == 0:
            return cand
    return 1


def self_attention_cnn(x, seed=0):
    """x: (B, N, D) array (torch.bmm layout). Returns (B, N, D)."""
    B, N, D = x.shape

    # Lane-dense layout: zero-pad channels to a multiple of 128.
    d_pad = ((D + 127) // 128) * 128
    x_p = jnp.pad(x, ((0, 0), (0, 0), (0, d_pad - D))) if d_pad != D else x

    bb = _pick_batch_block(B)
    bits = _dropout_bits(seed, B, N)

    out = pl.pallas_call(
        functools.partial(_self_attention_kernel, d_model=D),
        out_shape=jax.ShapeDtypeStruct((B, N, d_pad), x.dtype),
        grid_spec=pltpu.PrefetchScalarGridSpec(
            num_scalar_prefetch=0,
            grid=(B // bb,),
            in_specs=[
                pl.BlockSpec((bb, N, d_pad), lambda b: (b, 0, 0)),
                pl.BlockSpec((bb, N, N), lambda b: (b, 0, 0)),
            ],
            out_specs=pl.BlockSpec((bb, N, d_pad), lambda b: (b, 0, 0)),
        ),
        compiler_params=pltpu.CompilerParams(
            # Batch blocks are fully independent (mask is an input, no stateful
            # PRNG) -> safe to shard across TensorCores on v7x.
            dimension_semantics=("parallel",),
        ),
    )(x_p, bits)

    return out[..., :D] if d_pad != D else out


if __name__ == "__main__":
    key = jax.random.PRNGKey(0)
    B, N, D = 8, 128, 32
    x = jax.random.normal(key, (B, N, D), dtype=jnp.float32)

    out = jax.block_until_ready(self_attention_cnn(x, seed=0))
    assert out.shape == (B, N, D)
    assert bool(jnp.all(jnp.isfinite(out)))

    # Pure-JAX reference with the identical dropout mask; loose tolerance for the
    # bf16 MXU operands + approx reciprocal used inside the kernel.
    keep = _dropout_bits(0, B, N) >= 0
    scores = jnp.einsum("bnd,bmd->bnm", x, x) / math.sqrt(D)
    attn = jax.nn.softmax(scores, axis=-1)
    attn = jnp.where(keep, attn * 2.0, 0.0)
    ref = jnp.einsum("bnm,bmd->bnd", attn, x)
    assert bool(jnp.allclose(out, ref, rtol=5e-2, atol=5e-2)), (
        f"max abs err {float(jnp.max(jnp.abs(out - ref)))}"
    )

    print("KERNEL_OK")
</pallas_src>

<mosaic_0001>
module attributes {stable_mosaic.version = 11 : i64} {
  func.func @_self_attention_kernel(%arg0: i32, %arg1: memref<4x128x128xf32, #tpu.memory_space<vmem>>, %arg2: memref<4x128x128xi32, #tpu.memory_space<vmem>>, %arg3: memref<4x128x128xf32, #tpu.memory_space<vmem>>) attributes {dimension_semantics = [#tpu.dimension_semantics<parallel>], iteration_bounds = array<i64: 2>, scalar_prefetch = 0 : i64, scratch_operands = 0 : i64, tpu.core_type = #tpu.core_type<tc>, window_params = [{transform_indices = @transform_0, window_bounds = array<i64: 4, 128, 128>}, {transform_indices = @transform_1, window_bounds = array<i64: 4, 128, 128>}, {transform_indices = @transform_2, window_bounds = array<i64: 4, 128, 128>}]} {
    %c0 = arith.constant 0 : index
    %c0_0 = arith.constant 0 : index
    %c0_1 = arith.constant 0 : index
    %0 = vector.load %arg1[%c0, %c0_0, %c0_1] : memref<4x128x128xf32, #tpu.memory_space<vmem>>, vector<4x128x128xf32>
    %cst = arith.constant 0.176776692 : f32
    %1 = vector.broadcast %cst : f32 to vector<4x128x128xf32>
    %2 = arith.mulf %0, %1 : vector<4x128x128xf32>
    %3 = arith.truncf %2 : vector<4x128x128xf32> to vector<4x128x128xbf16>
    %4 = arith.truncf %0 : vector<4x128x128xf32> to vector<4x128x128xbf16>
    "tpu.trace_start"() <{level = 10 : i32, message = "bnd,bmd->bnm"}> : () -> ()
    %cst_2 = arith.constant dense<0.000000e+00> : vector<4x128x128xf32>
    %5 = tpu.matmul %3, %4, %cst_2 {dimension_numbers = #tpu.dot_dimension_numbers<[2], [2], [1], [1], [0, 0, 0, 1, 1, 1], [0], [0]>} : vector<4x128x128xbf16>, vector<4x128x128xbf16>, vector<4x128x128xf32> -> vector<4x128x128xf32>
    "tpu.trace_stop"() : () -> ()
    %cst_3 = arith.constant dense<0xFF800000> : vector<4x128xf32>
    %6 = vector.multi_reduction <maximumf>, %5, %cst_3 [2] : vector<4x128x128xf32> to vector<4x128xf32>
    %7 = vector.shape_cast %6 : vector<4x128xf32> to vector<4x128x1xf32>
    %8 = vector.broadcast %7 : vector<4x128x1xf32> to vector<4x128x128xf32>
    %9 = arith.subf %5, %8 : vector<4x128x128xf32>
    %10 = math.exp %9 : vector<4x128x128xf32>
    %cst_4 = arith.constant dense<0.000000e+00> : vector<4x128xf32>
    %11 = vector.multi_reduction <add>, %10, %cst_4 [2] : vector<4x128x128xf32> to vector<4x128xf32>
    %12 = vector.shape_cast %11 : vector<4x128xf32> to vector<4x128x1xf32>
    %c0_5 = arith.constant 0 : index
    %c0_6 = arith.constant 0 : index
    %c0_7 = arith.constant 0 : index
    %13 = vector.load %arg2[%c0_5, %c0_6, %c0_7] : memref<4x128x128xi32, #tpu.memory_space<vmem>>, vector<4x128x128xi32>
    %c0_i32 = arith.constant 0 : i32
    %14 = vector.broadcast %c0_i32 : i32 to vector<4x128x128xi32>
    %15 = arith.cmpi sge, %13, %14 : vector<4x128x128xi32>
    %cst_8 = arith.constant 0.000000e+00 : f32
    %16 = vector.broadcast %cst_8 : f32 to vector<4x128x128xf32>
    %17 = arith.select %15, %10, %16 : vector<4x128x128xi1>, vector<4x128x128xf32>
    %18 = arith.truncf %17 : vector<4x128x128xf32> to vector<4x128x128xbf16>
    "tpu.trace_start"() <{level = 10 : i32, message = "bnm,bmd->bnd"}> : () -> ()
    %cst_9 = arith.constant dense<0.000000e+00> : vector<4x128x128xf32>
    %19 = tpu.matmul %18, %4, %cst_9 {dimension_numbers = #tpu.dot_dimension_numbers<[2], [1], [1], [2], [0, 0, 0, 1, 1, 2], [0], [0]>} : vector<4x128x128xbf16>, vector<4x128x128xbf16>, vector<4x128x128xf32> -> vector<4x128x128xf32>
    "tpu.trace_stop"() : () -> ()
    %20 = tpu.reciprocal %12 {approx = true} : vector<4x128x1xf32> -> vector<4x128x1xf32>
    %cst_10 = arith.constant 2.000000e+00 : f32
    %21 = vector.broadcast %cst_10 : f32 to vector<4x128x1xf32>
    %22 = arith.mulf %21, %20 : vector<4x128x1xf32>
    %23 = vector.broadcast %22 : vector<4x128x1xf32> to vector<4x128x128xf32>
    %24 = arith.mulf %19, %23 : vector<4x128x128xf32>
    %c0_11 = arith.constant 0 : index
    %c0_12 = arith.constant 0 : index
    %c0_13 = arith.constant 0 : index
    %25 = vector.load %arg3[%c0_11, %c0_12, %c0_13] : memref<4x128x128xf32, #tpu.memory_space<vmem>>, vector<4x128x128xf32>
    tpu.vector_store %arg3[%c0_11, %c0_12, %c0_13], %24 {strides = array<i32>} : memref<4x128x128xf32, #tpu.memory_space<vmem>>, vector<4x128x128xf32>,
    return
  }
  func.func @transform_0(%arg0: i32) -> (i32, i32, i32) {
    %c0_i32 = arith.constant 0 : i32
    %c0_i32_0 = arith.constant 0 : i32
    %c0_i32_1 = arith.constant 0 : i32
    return %arg0, %c0_i32, %c0_i32_0 : i32, i32, i32
  }
  func.func @transform_1(%arg0: i32) -> (i32, i32, i32) {
    %c0_i32 = arith.constant 0 : i32
    %c0_i32_0 = arith.constant 0 : i32
    %c0_i32_1 = arith.constant 0 : i32
    return %arg0, %c0_i32, %c0_i32_0 : i32, i32, i32
  }
  func.func @transform_2(%arg0: i32) -> (i32, i32, i32) {
    %c0_i32 = arith.constant 0 : i32
    %c0_i32_0 = arith.constant 0 : i32
    %c0_i32_1 = arith.constant 0 : i32
    return %arg0, %c0_i32, %c0_i32_0 : i32, i32, i32
  }
}

</mosaic_0001>

<llo_original>
// kernel: tpu_custom_call.1
$region0: #{tpu_custom_call.1}
  #allocation0 [shape = 'u32[]', space=smem, size = 0x4, offset = 0x4, fixed_abs, tag = 'smem constant byte address 0x4 - core index']
  #allocation1 [shape = 'u32[72,128]{1,0:T(1,128)}', space=vmem, size = 0x9000, scoped, tag = 'internal scratch']
  %s0 = inlined_call_operand.hbm [shape: f32[8,128,128], index: 0, kind: input, shape index: {}]
  %s1 = inlined_call_operand.hbm [shape: s32[8,128,128], index: 1, kind: input, shape index: {}]
  %s2 = inlined_call_operand.hbm [shape: f32[8,128,128], index: 2, kind: output, shape index: {}]
  %s3 = sld [smem:[#allocation0]]
  $region49: #{tpu_custom_call.1} parent=0
    _
  %s5 = ssub.s32 1, %s3
  %s6 = scalar_select 0, %s5, %s3
  $region1: #{tpu_custom_call.1} parent=0
    #allocation2 [shape = 'u8[524288]{0}', space=vmem, size = 0x80000, scoped, tag = 'input window, operand 0']
    #allocation3 [shape = 's32[2]{0}', space=sflag, size = 0x8, scoped, tag = 'scoped memory for tpu_custom_call.1']
    #allocation4 [shape = 's32[2]{0}', space=sflag, size = 0x8, scoped, tag = 'scoped memory for tpu_custom_call.1']
    #allocation5 [shape = 'u8[524288]{0}', space=vmem, size = 0x80000, scoped, tag = 'input window, operand 1']
    #allocation6 [shape = 's32[2]{0}', space=sflag, size = 0x8, scoped, tag = 'scoped memory for tpu_custom_call.1']
    #allocation7 [shape = 'u8[524288]{0}', space=vmem, size = 0x80000, scoped, tag = 'output window, operand 0']
    %7 = vsyncpa [#allocation3], 0
    %s8 = scalar_lea.sflag [#allocation3], 1
    %9 = vsyncpa %s8, 0
    %10 = vsyncpa [#allocation6], 0
    %s11 = scalar_lea.sflag [#allocation6], 1
    %12 = vsyncpa %s11, 0
    %13 = vsyncpa [#allocation4], 0
    %s14 = scalar_lea.sflag [#allocation4], 1
    %15 = vsyncpa %s14, 0
    loop: start=0, step=1, limit=4
    $region2: #{tpu_custom_call.1} parent=1 // loop_pre_header
      _
    $region3: #{tpu_custom_call.1} parent=1 // loop_header
      %s17 = sphi 0, %s21
      %p18 = scmp.ge.s32.totalorder %s17, 4
      %s27 = sphi 0, %s29
      %s30 = sphi 0, %s27
      %s31 = sphi 0, %s30
      %s47 = sphi 0, %s31
      %s53 = sphi 0, %s55
      %s56 = sphi 0, %s53
      %s57 = sphi 0, %s56
      %s73 = sphi 0, %s57
      %s79 = sphi 0, %s81
      %s82 = sphi 0, %s79
      %s83 = sphi 0, %s82
      %s99 = sphi 0, %s83
    $region4: #{tpu_custom_call.1} parent=1 // loop_header_branch
      %20 = sbr.rel (%p18) target = $region8
    $region5: #{tpu_custom_call.1} parent=1 // loop_body
      %s22 = ssub.s32 %s17, 1
      %s23 = ssub.s32 %s17, 2
      %s24 = sadd.s32 %s17, 1
      %s25 = ssub.s32 %s17, %s24
      %p26 = scmp.eq.s32.totalorder %s25, 0
      %s28 = sadd.s32 %s27, 1
      %s29 = scalar_select %p26, %s27, %s28
      %p32 = pneg %p26
      %p33 = scmp.eq.s32.totalorder %s17, 1
      %p34 = por %p32, %p33
      %p35 = scmp.ne.s32.totalorder %s27, %s30
      %p36 = scmp.eq.s32.totalorder %s17, 0
      %p37 = por %p35, %p36
      %p38 = scmp.ne.s32.totalorder %s27, %s30
      %p39 = scmp.eq.s32.totalorder %s22, 1
      %p40 = por %p38, %p39
      %p41 = scmp.ne.s32.totalorder %s30, %s31
      %p42 = scmp.eq.s32.totalorder %s22, 0
      %p43 = por %p41, %p42
      %p44 = scmp.ne.s32.totalorder %s30, %s31
      %p45 = scmp.eq.s32.totalorder %s23, 1
      %p46 = por %p44, %p45
      %p48 = scmp.ne.s32.totalorder %s31, %s47
      %p49 = scmp.eq.s32.totalorder %s23, 0
      %p50 = por %p48, %p49
      %s51 = ssub.s32 %s17, %s24
      %p52 = scmp.eq.s32.totalorder %s51, 0
      %s54 = sadd.s32 %s53, 1
      %s55 = scalar_select %p52, %s53, %s54
      %p58 = pneg %p52
      %p59 = scmp.eq.s32.totalorder %s17, 1
      %p60 = por %p58, %p59
      %p61 = scmp.ne.s32.totalorder %s53, %s56
      %p62 = scmp.eq.s32.totalorder %s17, 0
      %p63 = por %p61, %p62
      %p64 = scmp.ne.s32.totalorder %s53, %s56
      %p65 = scmp.eq.s32.totalorder %s22, 1
      %p66 = por %p64, %p65
      %p67 = scmp.ne.s32.totalorder %s56, %s57
      %p68 = scmp.eq.s32.totalorder %s22, 0
      %p69 = por %p67, %p68
      %p70 = scmp.ne.s32.totalorder %s56, %s57
      %p71 = scmp.eq.s32.totalorder %s23, 1
      %p72 = por %p70, %p71
      %p74 = scmp.ne.s32.totalorder %s57, %s73
      %p75 = scmp.eq.s32.totalorder %s23, 0
      %p76 = por %p74, %p75
      %s77 = ssub.s32 %s17, %s24
      %p78 = scmp.eq.s32.totalorder %s77, 0
      %s80 = sadd.s32 %s79, 1
      %s81 = scalar_select %p78, %s79, %s80
      %p84 = pneg %p78
      %p85 = scmp.eq.s32.totalorder %s17, 1
      %p86 = por %p84, %p85
      %p87 = scmp.ne.s32.totalorder %s79, %s82
      %p88 = scmp.eq.s32.totalorder %s17, 0
      %p89 = por %p87, %p88
      %p90 = scmp.ne.s32.totalorder %s79, %s82
      %p91 = scmp.eq.s32.totalorder %s22, 1
      %p92 = por %p90, %p91
      %p93 = scmp.ne.s32.totalorder %s82, %s83
      %p94 = scmp.eq.s32.totalorder %s22, 0
      %p95 = por %p93, %p94
      %p96 = scmp.ne.s32.totalorder %s82, %s83
      %p97 = scmp.eq.s32.totalorder %s23, 1
      %p98 = por %p96, %p97
      %p100 = scmp.ne.s32.totalorder %s83, %s99
      %p101 = scmp.eq.s32.totalorder %s23, 0
      %p102 = por %p100, %p101
      %p103 = scmp.le.s32.totalorder 1, %s17
      %p104 = scmp.lt.s32.totalorder %s17, 3
      %p105 = pnand %p103, %p104
      %p106 = pneg %p105
      // Predicated region
      $region9: #{tpu_custom_call.1} parent=5 // pred_check
        _
      $region10: #{tpu_custom_call.1} parent=5 // pred_check_branch
        %108 = sbr.rel (%p105) target = $region12
      $region11: #{tpu_custom_call.1} parent=5 // pred_region
        %s109 = ssub.s32 %s17, 1
      $region12: #{tpu_custom_call.1} parent=5 // pred_fallthru
        _
      %p110 = scmp.lt.s32.totalorder %s17, 2
      // Predicated region
      $region13: #{tpu_custom_call.1} parent=5 // pred_check
        %p111 = pneg %p110
      $region14: #{tpu_custom_call.1} parent=5 // pred_check_branch
        %113 = sbr.rel (%p111) target = $region16
      $region15: #{tpu_custom_call.1} parent=5 // pred_region
        // Predicated region
        $region17: #{tpu_custom_call.1} parent=15 // pred_check
          %p114 = pneg %p37
        $region18: #{tpu_custom_call.1} parent=15 // pred_check_branch
          %116 = sbr.rel (%p114) target = $region20
        $region19: #{tpu_custom_call.1} parent=15 // pred_region
          %s117 = sand.u32 %s27, 1
          %s118 = scalar_lea.sflag [#allocation3], %s117
          %s119 = sand.u32 %s27, 1
          %s120 = smul.addr %s119, 512
          %s121 = scalar_lea.vmem [#allocation2], %s120
          %s122 = smul.u32 4, %s17
          %124 = vsyncadd %s118, 0
          %s125 = smul.addr %s122, 16
          %s126 = smul.addr %s125, 8
          %s127 = scalar_lea.hbm %s0, %s126
          %s128 = sshll.u32 %s127, 4
          %s129 = int_to_ptr.hbm [resolvable:$true] %s128
          %s130 = sshll.u32 %s121, 4
          %s131 = int_to_ptr.vmem [resolvable:$true] %s130
          %136 = dma.hbm_to_vmem [thread:$0]  %s129, 8192, %s131, %s118, 128, 128, 8
        $region20: #{tpu_custom_call.1} parent=15 // pred_fallthru
          _
        // Predicated region
        $region21: #{tpu_custom_call.1} parent=15 // pred_check
          %p137 = pneg %p63
        $region22: #{tpu_custom_call.1} parent=15 // pred_check_branch
          %139 = sbr.rel (%p137) target = $region24
        $region23: #{tpu_custom_call.1} parent=15 // pred_region
          %s140 = sand.u32 %s53, 1
          %s141 = scalar_lea.sflag [#allocation6], %s140
          %s142 = sand.u32 %s53, 1
          %s143 = smul.addr %s142, 512
          %s144 = scalar_lea.vmem [#allocation5], %s143
          %s145 = smul.u32 4, %s17
          %147 = vsyncadd %s141, 0
          %s148 = smul.addr %s145, 16
          %s149 = smul.addr %s148, 8
          %s150 = scalar_lea.hbm %s1, %s149
          %s151 = sshll.u32 %s150, 4
          %s152 = int_to_ptr.hbm [resolvable:$true] %s151
          %s153 = sshll.u32 %s144, 4
          %s154 = int_to_ptr.vmem [resolvable:$true] %s153
          %159 = dma.hbm_to_vmem [thread:$0]  %s152, 8192, %s154, %s141, 128, 128, 8
        $region24: #{tpu_custom_call.1} parent=15 // pred_fallthru
          _
      $region16: #{tpu_custom_call.1} parent=5 // pred_fallthru
        _
      %p160 = scmp.le.s32.totalorder 1, %s17
      %p161 = scmp.lt.s32.totalorder %s17, 3
      %p162 = pnand %p160, %p161
      %p163 = pneg %p162
      // Predicated region
      $region25: #{tpu_custom_call.1} parent=5 // pred_check
        _
      $region26: #{tpu_custom_call.1} parent=5 // pred_check_branch
        %165 = sbr.rel (%p162) target = $region28
      $region27: #{tpu_custom_call.1} parent=5 // pred_region
        %s166 = ssub.s32 %s17, 1
        %s167 = sand.u32 %s30, 1
        %s168 = scalar_lea.sflag [#allocation3], %s167
        %s169 = sand.u32 %s30, 1
        %s170 = smul.addr %s169, 512
        %s171 = scalar_lea.vmem [#allocation2], %s170
        // Predicated region
        $region29: #{tpu_custom_call.1} parent=27 // pred_check
          %p172 = pneg %p43
        $region30: #{tpu_custom_call.1} parent=27 // pred_check_branch
          %174 = sbr.rel (%p172) target = $region32
        $region31: #{tpu_custom_call.1} parent=27 // pred_region
          %176 = dma.done %s168, 8192
        $region32: #{tpu_custom_call.1} parent=27 // pred_fallthru
          _
        %s177 = sand.u32 %s56, 1
        %s178 = scalar_lea.sflag [#allocation6], %s177
        %s179 = sand.u32 %s56, 1
        %s180 = smul.addr %s179, 512
        %s181 = scalar_lea.vmem [#allocation5], %s180
        // Predicated region
        $region33: #{tpu_custom_call.1} parent=27 // pred_check
          %p182 = pneg %p69
        $region34: #{tpu_custom_call.1} parent=27 // pred_check_branch
          %184 = sbr.rel (%p182) target = $region36
        $region35: #{tpu_custom_call.1} parent=27 // pred_region
          %186 = dma.done %s178, 8192
        $region36: #{tpu_custom_call.1} parent=27 // pred_fallthru
          _
        %s187 = sand.u32 %s30, 1
        %s188 = scalar_lea.sflag [#allocation3], %s187
        %s189 = sand.u32 %s30, 1
        %s190 = smul.addr %s189, 512
        %s191 = scalar_lea.vmem [#allocation2], %s190
        %p192 = pneg %p43
        %p193 = pneg %p40
        %s194 = sand.u32 %s56, 1
        %s195 = scalar_lea.sflag [#allocation6], %s194
        %s196 = sand.u32 %s56, 1
        %s197 = smul.addr %s196, 512
        %s198 = scalar_lea.vmem [#allocation5], %s197
        %p199 = pneg %p69
        %p200 = pneg %p66
        %p201 = pneg %p95
        %p202 = pneg %p92
        %s203 = sand.u32 %s82, 1
        %s204 = scalar_lea.sflag [#allocation4], %s203
        %s205 = sand.u32 %s82, 1
        %s206 = smul.addr %s205, 512
        %s207 = scalar_lea.vmem [#allocation7], %s206
        %s208 = smul.u32 4, %s22
        %s209 = smul.u32 4, %s22
        %s210 = smul.u32 4, %s22
        %v211 = vld [vmem:[%s171] sm:$0xff]
        %v212 = vld [vmem:[%s171 + $0x8] sm:$0xff]
        %v213 = vld [vmem:[%s171 + $0x10] sm:$0xff]
        %v214 = vld [vmem:[%s171 + $0x18] sm:$0xff]
        %v215 = vld [vmem:[%s171 + $0x20] sm:$0xff]
        %v216 = vld [vmem:[%s171 + $0x28] sm:$0xff]
        %v217 = vld [vmem:[%s171 + $0x30] sm:$0xff]
        %v218 = vld [vmem:[%s171 + $0x38] sm:$0xff]
        %v219 = vld [vmem:[%s171 + $0x40] sm:$0xff]
        %v220 = vld [vmem:[%s171 + $0x48] sm:$0xff]
        %v221 = vld [vmem:[%s171 + $0x50] sm:$0xff]
        %v222 = vld [vmem:[%s171 + $0x58] sm:$0xff]
        %v223 = vld [vmem:[%s171 + $0x60] sm:$0xff]
        %v224 = vld [vmem:[%s171 + $0x68] sm:$0xff]
        %v225 = vld [vmem:[%s171 + $0x70] sm:$0xff]
        %v226 = vld [vmem:[%s171 + $0x78] sm:$0xff]
        %v227 = vld [vmem:[%s171 + $0x80] sm:$0xff]
        %v228 = vld [vmem:[%s171 + $0x88] sm:$0xff]
        %v229 = vld [vmem:[%s171 + $0x90] sm:$0xff]
        %v230 = vld [vmem:[%s171 + $0x98] sm:$0xff]
        %v231 = vld [vmem:[%s171 + $0xa0] sm:$0xff]
        %v232 = vld [vmem:[%s171 + $0xa8] sm:$0xff]
        %v233 = vld [vmem:[%s171 + $0xb0] sm:$0xff]
        %v234 = vld [vmem:[%s171 + $0xb8] sm:$0xff]
        %v235 = vld [vmem:[%s171 + $0xc0] sm:$0xff]
        %v236 = vld [vmem:[%s171 + $0xc8] sm:$0xff]
        %v237 = vld [vmem:[%s171 + $0xd0] sm:$0xff]
        %v238 = vld [vmem:[%s171 + $0xd8] sm:$0xff]
        %v239 = vld [vmem:[%s171 + $0xe0] sm:$0xff]
        %v240 = vld [vmem:[%s171 + $0xe8] sm:$0xff]
        %v241 = vld [vmem:[%s171 + $0xf0] sm:$0xff]
        %v242 = vld [vmem:[%s171 + $0xf8] sm:$0xff]
        %v243 = vld [vmem:[%s171 + $0x100] sm:$0xff]
        %v244 = vld [vmem:[%s171 + $0x108] sm:$0xff]
        %v245 = vld [vmem:[%s171 + $0x110] sm:$0xff]
        %v246 = vld [vmem:[%s171 + $0x118] sm:$0xff]
        %v247 = vld [vmem:[%s171 + $0x120] sm:$0xff]
        %v248 = vld [vmem:[%s171 + $0x128] sm:$0xff]
        %v249 = vld [vmem:[%s171 + $0x130] sm:$0xff]
        %v250 = vld [vmem:[%s171 + $0x138] sm:$0xff]
        %v251 = vld [vmem:[%s171 + $0x140] sm:$0xff]
        %v252 = vld [vmem:[%s171 + $0x148] sm:$0xff]
        %v253 = vld [vmem:[%s171 + $0x150] sm:$0xff]
        %v254 = vld [vmem:[%s171 + $0x158] sm:$0xff]
        %v255 = vld [vmem:[%s171 + $0x160] sm:$0xff]
        %v256 = vld [vmem:[%s171 + $0x168] sm:$0xff]
        %v257 = vld [vmem:[%s171 + $0x170] sm:$0xff]
        %v258 = vld [vmem:[%s171 + $0x178] sm:$0xff]
        %v259 = vld [vmem:[%s171 + $0x180] sm:$0xff]
        %v260 = vld [vmem:[%s171 + $0x188] sm:$0xff]
        %v261 = vld [vmem:[%s171 + $0x190] sm:$0xff]
        %v262 = vld [vmem:[%s171 + $0x198] sm:$0xff]
        %v263 = vld [vmem:[%s171 + $0x1a0] sm:$0xff]
        %v264 = vld [vmem:[%s171 + $0x1a8] sm:$0xff]
        %v265 = vld [vmem:[%s171 + $0x1b0] sm:$0xff]
        %v266 = vld [vmem:[%s171 + $0x1b8] sm:$0xff]
        %v267 = vld [vmem:[%s171 + $0x1c0] sm:$0xff]
        %v268 = vld [vmem:[%s171 + $0x1c8] sm:$0xff]
        %v269 = vld [vmem:[%s171 + $0x1d0] sm:$0xff]
        %v270 = vld [vmem:[%s171 + $0x1d8] sm:$0xff]
        %v271 = vld [vmem:[%s171 + $0x1e0] sm:$0xff]
        %v272 = vld [vmem:[%s171 + $0x1e8] sm:$0xff]
        %v273 = vld [vmem:[%s171 + $0x1f0] sm:$0xff]
        %v274 = vld [vmem:[%s171 + $0x1f8] sm:$0xff]
        %v275 = vmul.f32 %v211, 0.17677669
        %v276 = vmul.f32 %v212, 0.17677669
        %v277 = vmul.f32 %v213, 0.17677669
        %v278 = vmul.f32 %v214, 0.17677669
        %v279 = vmul.f32 %v215, 0.17677669
        %v280 = vmul.f32 %v216, 0.17677669
        %v281 = vmul.f32 %v217, 0.17677669
        %v282 = vmul.f32 %v218, 0.17677669
        %v283 = vmul.f32 %v219, 0.17677669
        %v284 = vmul.f32 %v220, 0.17677669
        %v285 = vmul.f32 %v221, 0.17677669
        %v286 = vmul.f32 %v222, 0.17677669
        %v287 = vmul.f32 %v223, 0.17677669
        %v288 = vmul.f32 %v224, 0.17677669
        %v289 = vmul.f32 %v225, 0.17677669
        %v290 = vmul.f32 %v226, 0.17677669
        %v291 = vmul.f32 %v227, 0.17677669
        %v292 = vmul.f32 %v228, 0.17677669
        %v293 = vmul.f32 %v229, 0.17677669
        %v294 = vmul.f32 %v230, 0.17677669
        %v295 = vmul.f32 %v231, 0.17677669
        %v296 = vmul.f32 %v232, 0.17677669
        %v297 = vmul.f32 %v233, 0.17677669
        %v298 = vmul.f32 %v234, 0.17677669
        %v299 = vmul.f32 %v235, 0.17677669
        %v300 = vmul.f32 %v236, 0.17677669
        %v301 = vmul.f32 %v237, 0.17677669
        %v302 = vmul.f32 %v238, 0.17677669
        %v303 = vmul.f32 %v239, 0.17677669
        %v304 = vmul.f32 %v240, 0.17677669
        %v305 = vmul.f32 %v241, 0.17677669
        %v306 = vmul.f32 %v242, 0.17677669
        %v307 = vmul.f32 %v243, 0.17677669
        %v308 = vmul.f32 %v244, 0.17677669
        %v309 = vmul.f32 %v245, 0.17677669
        %v310 = vmul.f32 %v246, 0.17677669
        %v311 = vmul.f32 %v247, 0.17677669
        %v312 = vmul.f32 %v248, 0.17677669
        %v313 = vmul.f32 %v249, 0.17677669
        %v314 = vmul.f32 %v250, 0.17677669
        %v315 = vmul.f32 %v251, 0.17677669
        %v316 = vmul.f32 %v252, 0.17677669
        %v317 = vmul.f32 %v253, 0.17677669
        %v318 = vmul.f32 %v254, 0.17677669
        %v319 = vmul.f32 %v255, 0.17677669
        %v320 = vmul.f32 %v256, 0.17677669
        %v321 = vmul.f32 %v257, 0.17677669
        %v322 = vmul.f32 %v258, 0.17677669
        %v323 = vmul.f32 %v259, 0.17677669
        %v324 = vmul.f32 %v260, 0.17677669
        %v325 = vmul.f32 %v261, 0.17677669
        %v326 = vmul.f32 %v262, 0.17677669
        %v327 = vmul.f32 %v263, 0.17677669
        %v328 = vmul.f32 %v264, 0.17677669
        %v329 = vmul.f32 %v265, 0.17677669
        %v330 = vmul.f32 %v266, 0.17677669
        %v331 = vmul.f32 %v267, 0.17677669
        %v332 = vmul.f32 %v268, 0.17677669
        %v333 = vmul.f32 %v269, 0.17677669
        %v334 = vmul.f32 %v270, 0.17677669
        %v335 = vmul.f32 %v271, 0.17677669
        %v336 = vmul.f32 %v272, 0.17677669
        %v337 = vmul.f32 %v273, 0.17677669
        %v338 = vmul.f32 %v274, 0.17677669
        %v339 = vpack.c.bf16 %v275, %v275
        %v340 = vpack.c.bf16 %v276, %v276
        %v341 = vpack.c.bf16 %v277, %v277
        %v342 = vpack.c.bf16 %v278, %v278
        %v343 = vpack.c.bf16 %v279, %v279
        %v344 = vpack.c.bf16 %v280, %v280
        %v345 = vpack.c.bf16 %v281, %v281
        %v346 = vpack.c.bf16 %v282, %v282
        %v347 = vpack.c.bf16 %v283, %v283
        %v348 = vpack.c.bf16 %v284, %v284
        %v349 = vpack.c.bf16 %v285, %v285
        %v350 = vpack.c.bf16 %v286, %v286
        %v351 = vpack.c.bf16 %v287, %v287
        %v352 = vpack.c.bf16 %v288, %v288
        %v353 = vpack.c.bf16 %v289, %v289
        %v354 = vpack.c.bf16 %v290, %v290
        %v355 = vpack.c.bf16 %v291, %v291
        %v356 = vpack.c.bf16 %v292, %v292
        %v357 = vpack.c.bf16 %v293, %v293
        %v358 = vpack.c.bf16 %v294, %v294
        %v359 = vpack.c.bf16 %v295, %v295
        %v360 = vpack.c.bf16 %v296, %v296
        %v361 = vpack.c.bf16 %v297, %v297
        %v362 = vpack.c.bf16 %v298, %v298
        %v363 = vpack.c.bf16 %v299, %v299
        %v364 = vpack.c.bf16 %v300, %v300
        %v365 = vpack.c.bf16 %v301, %v301
        %v366 = vpack.c.bf16 %v302, %v302
        %v367 = vpack.c.bf16 %v303, %v303
        %v368 = vpack.c.bf16 %v304, %v304
        %v369 = vpack.c.bf16 %v305, %v305
        %v370 = vpack.c.bf16 %v306, %v306
        %v371 = vpack.c.bf16 %v307, %v307
        %v372 = vpack.c.bf16 %v308, %v308
        %v373 = vpack.c.bf16 %v309, %v309
        %v374 = vpack.c.bf16 %v310, %v310
        %v375 = vpack.c.bf16 %v311, %v311
        %v376 = vpack.c.bf16 %v312, %v312
        %v377 = vpack.c.bf16 %v313, %v313
        %v378 = vpack.c.bf16 %v314, %v314
        %v379 = vpack.c.bf16 %v315, %v315
        %v380 = vpack.c.bf16 %v316, %v316
        %v381 = vpack.c.bf16 %v317, %v317
        %v382 = vpack.c.bf16 %v318, %v318
        %v383 = vpack.c.bf16 %v319, %v319
        %v384 = vpack.c.bf16 %v320, %v320
        %v385 = vpack.c.bf16 %v321, %v321
        %v386 = vpack.c.bf16 %v322, %v322
        %v387 = vpack.c.bf16 %v323, %v323
        %v388 = vpack.c.bf16 %v324, %v324
        %v389 = vpack.c.bf16 %v325, %v325
        %v390 = vpack.c.bf16 %v326, %v326
        %v391 = vpack.c.bf16 %v327, %v327
        %v392 = vpack.c.bf16 %v328, %v328
        %v393 = vpack.c.bf16 %v329, %v329
        %v394 = vpack.c.bf16 %v330, %v330
        %v395 = vpack.c.bf16 %v331, %v331
        %v396 = vpack.c.bf16 %v332, %v332
        %v397 = vpack.c.bf16 %v333, %v333
        %v398 = vpack.c.bf16 %v334, %v334
        %v399 = vpack.c.bf16 %v335, %v335
        %v400 = vpack.c.bf16 %v336, %v336
        %v401 = vpack.c.bf16 %v337, %v337
        %v402 = vpack.c.bf16 %v338, %v338
        %v403 = vpack.c.bf16 %v211, %v211
        %v404 = vpack.c.bf16 %v212, %v212
        %v405 = vpack.c.bf16 %v213, %v213
        %v406 = vpack.c.bf16 %v214, %v214
        %v407 = vpack.c.bf16 %v215, %v215
        %v408 = vpack.c.bf16 %v216, %v216
        %v409 = vpack.c.bf16 %v217, %v217
        %v410 = vpack.c.bf16 %v218, %v218
        %v411 = vpack.c.bf16 %v219, %v219
        %v412 = vpack.c.bf16 %v220, %v220
        %v413 = vpack.c.bf16 %v221, %v221
        %v414 = vpack.c.bf16 %v222, %v222
        %v415 = vpack.c.bf16 %v223, %v223
        %v416 = vpack.c.bf16 %v224, %v224
        %v417 = vpack.c.bf16 %v225, %v225
        %v418 = vpack.c.bf16 %v226, %v226
        %v419 = vpack.c.bf16 %v227, %v227
        %v420 = vpack.c.bf16 %v228, %v228
        %v421 = vpack.c.bf16 %v229, %v229
        %v422 = vpack.c.bf16 %v230, %v230
        %v423 = vpack.c.bf16 %v231, %v231
        %v424 = vpack.c.bf16 %v232, %v232
        %v425 = vpack.c.bf16 %v233, %v233
        %v426 = vpack.c.bf16 %v234, %v234
        %v427 = vpack.c.bf16 %v235, %v235
        %v428 = vpack.c.bf16 %v236, %v236
        %v429 = vpack.c.bf16 %v237, %v237
        %v430 = vpack.c.bf16 %v238, %v238
        %v431 = vpack.c.bf16 %v239, %v239
        %v432 = vpack.c.bf16 %v240, %v240
        %v433 = vpack.c.bf16 %v241, %v241
        %v434 = vpack.c.bf16 %v242, %v242
        %v435 = vpack.c.bf16 %v243, %v243
        %v436 = vpack.c.bf16 %v244, %v244
        %v437 = vpack.c.bf16 %v245, %v245
        %v438 = vpack.c.bf16 %v246, %v246
        %v439 = vpack.c.bf16 %v247, %v247
        %v440 = vpack.c.bf16 %v248, %v248
        %v441 = vpack.c.bf16 %v249, %v249
        %v442 = vpack.c.bf16 %v250, %v250
        %v443 = vpack.c.bf16 %v251, %v251
        %v444 = vpack.c.bf16 %v252, %v252
        %v445 = vpack.c.bf16 %v253, %v253
        %v446 = vpack.c.bf16 %v254, %v254
        %v447 = vpack.c.bf16 %v255, %v255
        %v448 = vpack.c.bf16 %v256, %v256
        %v449 = vpack.c.bf16 %v257, %v257
        %v450 = vpack.c.bf16 %v258, %v258
        %v451 = vpack.c.bf16 %v259, %v259
        %v452 = vpack.c.bf16 %v260, %v260
        %v453 = vpack.c.bf16 %v261, %v261
        %v454 = vpack.c.bf16 %v262, %v262
        %v455 = vpack.c.bf16 %v263, %v263
        %v456 = vpack.c.bf16 %v264, %v264
        %v457 = vpack.c.bf16 %v265, %v265
        %v458 = vpack.c.bf16 %v266, %v266
        %v459 = vpack.c.bf16 %v267, %v267
        %v460 = vpack.c.bf16 %v268, %v268
        %v461 = vpack.c.bf16 %v269, %v269
        %v462 = vpack.c.bf16 %v270, %v270
        %v463 = vpack.c.bf16 %v271, %v271
        %v464 = vpack.c.bf16 %v272, %v272
        %v465 = vpack.c.bf16 %v273, %v273
        %v466 = vpack.c.bf16 %v274, %v274
        %v483 = vunpack.c.l.b16 %v339
        %v484 = vunpack.c.l.b16 %v340
        %v485 = vunpack.c.l.b16 %v341
        %v486 = vunpack.c.l.b16 %v342
        %v487 = vunpack.c.l.b16 %v343
        %v488 = vunpack.c.l.b16 %v344
        %v489 = vunpack.c.l.b16 %v345
        %v490 = vunpack.c.l.b16 %v346
        %v491 = vunpack.c.l.b16 %v347
        %v492 = vunpack.c.l.b16 %v348
        %v493 = vunpack.c.l.b16 %v349
        %v494 = vunpack.c.l.b16 %v350
        %v495 = vunpack.c.l.b16 %v351
        %v496 = vunpack.c.l.b16 %v352
        %v497 = vunpack.c.l.b16 %v353
        %v498 = vunpack.c.l.b16 %v354
        %v499 = vpack.c.b16 %v484, %v483
        %v500 = vpack.c.b16 %v486, %v485
        %v501 = vpack.c.b16 %v488, %v487
        %v502 = vpack.c.b16 %v490, %v489
        %v503 = vpack.c.b16 %v492, %v491
        %v504 = vpack.c.b16 %v494, %v493
        %v505 = vpack.c.b16 %v496, %v495
        %v506 = vpack.c.b16 %v498, %v497
        %v531 = vunpack.c.l.b16 %v403
        %v532 = vunpack.c.l.b16 %v404
        %v533 = vunpack.c.l.b16 %v405
        %v534 = vunpack.c.l.b16 %v406
        %v535 = vunpack.c.l.b16 %v407
        %v536 = vunpack.c.l.b16 %v408
        %v537 = vunpack.c.l.b16 %v409
        %v538 = vunpack.c.l.b16 %v410
        %v539 = vunpack.c.l.b16 %v411
        %v540 = vunpack.c.l.b16 %v412
        %v541 = vunpack.c.l.b16 %v413
        %v542 = vunpack.c.l.b16 %v414
        %v543 = vunpack.c.l.b16 %v415
        %v544 = vunpack.c.l.b16 %v416
        %v545 = vunpack.c.l.b16 %v417
        %v546 = vunpack.c.l.b16 %v418
        %v547 = vpack.c.b16 %v532, %v531
        %v548 = vpack.c.b16 %v534, %v533
        %v549 = vpack.c.b16 %v536, %v535
        %v550 = vpack.c.b16 %v538, %v537
        %v551 = vpack.c.b16 %v540, %v539
        %v552 = vpack.c.b16 %v542, %v541
        %v553 = vpack.c.b16 %v544, %v543
        %v554 = vpack.c.b16 %v546, %v545
        %563 = vmatpush.bf16.xpose.msra.mxu0 %v554
        %564 = vmatpush.bf16.xpose.msra.mxu0 %v553
        %565 = vmatpush.bf16.xpose.msra.mxu0 %v552
        %566 = vmatpush.bf16.xpose.msra.mxu0 %v551
        %567 = vmatpush.bf16.xpose.msra.mxu0 %v550
        %568 = vmatpush.bf16.xpose.msra.mxu0 %v549
        %569 = vmatpush.bf16.xpose.msra.mxu0 %v548
        %570 = vmatpush.bf16.xpose.msra.mxu0 %v547
        %571 = vmatmul.bf16.gmra.mxu0 %v499
        %v572 = vpop.f32.mrf.mxu0
        %v573 = vadd.f32 0.0, %v572
        %v574 = vpop.f32.mrf.mxu0
        %v575 = vadd.f32 0.0, %v574
        %576 = vmatmul.bf16.gmra.mxu0 %v500
        %v577 = vpop.f32.mrf.mxu0
        %v578 = vadd.f32 0.0, %v577
        %v579 = vpop.f32.mrf.mxu0
        %v580 = vadd.f32 0.0, %v579
        %581 = vmatmul.bf16.gmra.mxu0 %v501
        %v582 = vpop.f32.mrf.mxu0
        %v583 = vadd.f32 0.0, %v582
        %v584 = vpop.f32.mrf.mxu0
        %v585 = vadd.f32 0.0, %v584
        %586 = vmatmul.bf16.gmra.mxu0 %v502
        %v587 = vpop.f32.mrf.mxu0
        %v588 = vadd.f32 0.0, %v587
        %v589 = vpop.f32.mrf.mxu0
        %v590 = vadd.f32 0.0, %v589
        %591 = vmatmul.bf16.gmra.mxu0 %v503
        %v592 = vpop.f32.mrf.mxu0
        %v593 = vadd.f32 0.0, %v592
        %v594 = vpop.f32.mrf.mxu0
        %v595 = vadd.f32 0.0, %v594
        %596 = vmatmul.bf16.gmra.mxu0 %v504
        %v597 = vpop.f32.mrf.mxu0
        %v598 = vadd.f32 0.0, %v597
        %v599 = vpop.f32.mrf.mxu0
        %v600 = vadd.f32 0.0, %v599
        %601 = vmatmul.bf16.gmra.mxu0 %v505
        %v602 = vpop.f32.mrf.mxu0
        %v603 = vadd.f32 0.0, %v602
        %v604 = vpop.f32.mrf.mxu0
        %v605 = vadd.f32 0.0, %v604
        %606 = vmatmul.bf16.gmra.mxu0 %v506
        %v607 = vpop.f32.mrf.mxu0
        %v608 = vadd.f32 0.0, %v607
        %v609 = vpop.f32.mrf.mxu0
        %v610 = vadd.f32 0.0, %v609
        %611 = vdwg.mxu0
        %v628 = vunpack.c.l.b16 %v355
        %v629 = vunpack.c.l.b16 %v356
        %v630 = vunpack.c.l.b16 %v357
        %v631 = vunpack.c.l.b16 %v358
        %v632 = vunpack.c.l.b16 %v359
        %v633 = vunpack.c.l.b16 %v360
        %v634 = vunpack.c.l.b16 %v361
        %v635 = vunpack.c.l.b16 %v362
        %v636 = vunpack.c.l.b16 %v363
        %v637 = vunpack.c.l.b16 %v364
        %v638 = vunpack.c.l.b16 %v365
        %v639 = vunpack.c.l.b16 %v366
        %v640 = vunpack.c.l.b16 %v367
        %v641 = vunpack.c.l.b16 %v368
        %v642 = vunpack.c.l.b16 %v369
        %v643 = vunpack.c.l.b16 %v370
        %v644 = vpack.c.b16 %v629, %v628
        %v645 = vpack.c.b16 %v631, %v630
        %v646 = vpack.c.b16 %v633, %v632
        %v647 = vpack.c.b16 %v635, %v634
        %v648 = vpack.c.b16 %v637, %v636
        %v649 = vpack.c.b16 %v639, %v638
        %v650 = vpack.c.b16 %v641, %v640
        %v651 = vpack.c.b16 %v643, %v642
        %v676 = vunpack.c.l.b16 %v419
        %v677 = vunpack.c.l.b16 %v420
        %v678 = vunpack.c.l.b16 %v421
        %v679 = vunpack.c.l.b16 %v422
        %v680 = vunpack.c.l.b16 %v423
        %v681 = vunpack.c.l.b16 %v424
        %v682 = vunpack.c.l.b16 %v425
        %v683 = vunpack.c.l.b16 %v426
        %v684 = vunpack.c.l.b16 %v427
        %v685 = vunpack.c.l.b16 %v428
        %v686 = vunpack.c.l.b16 %v429
        %v687 = vunpack.c.l.b16 %v430
        %v688 = vunpack.c.l.b16 %v431
        %v689 = vunpack.c.l.b16 %v432
        %v690 = vunpack.c.l.b16 %v433
        %v691 = vunpack.c.l.b16 %v434
        %v692 = vpack.c.b16 %v677, %v676
        %v693 = vpack.c.b16 %v679, %v678
        %v694 = vpack.c.b16 %v681, %v680
        %v695 = vpack.c.b16 %v683, %v682
        %v696 = vpack.c.b16 %v685, %v684
        %v697 = vpack.c.b16 %v687, %v686
        %v698 = vpack.c.b16 %v689, %v688
        %v699 = vpack.c.b16 %v691, %v690
        %708 = vmatpush.bf16.xpose.msra.mxu0 %v699
        %709 = vmatpush.bf16.xpose.msra.mxu0 %v698
        %710 = vmatpush.bf16.xpose.msra.mxu0 %v697
        %711 = vmatpush.bf16.xpose.msra.mxu0 %v696
        %712 = vmatpush.bf16.xpose.msra.mxu0 %v695
        %713 = vmatpush.bf16.xpose.msra.mxu0 %v694
        %714 = vmatpush.bf16.xpose.msra.mxu0 %v693
        %715 = vmatpush.bf16.xpose.msra.mxu0 %v692
        %716 = vmatmul.bf16.gmra.mxu0 %v644
        %v717 = vpop.f32.mrf.mxu0
        %v718 = vadd.f32 0.0, %v717
        %v719 = vpop.f32.mrf.mxu0
        %v720 = vadd.f32 0.0, %v719
        %721 = vmatmul.bf16.gmra.mxu0 %v645
        %v722 = vpop.f32.mrf.mxu0
        %v723 = vadd.f32 0.0, %v722
        %v724 = vpop.f32.mrf.mxu0
        %v725 = vadd.f32 0.0, %v724
        %726 = vmatmul.bf16.gmra.mxu0 %v646
        %v727 = vpop.f32.mrf.mxu0
        %v728 = vadd.f32 0.0, %v727
        %v729 = vpop.f32.mrf.mxu0
        %v730 = vadd.f32 0.0, %v729
        %731 = vmatmul.bf16.gmra.mxu0 %v647
        %v732 = vpop.f32.mrf.mxu0
        %v733 = vadd.f32 0.0, %v732
        %v734 = vpop.f32.mrf.mxu0
        %v735 = vadd.f32 0.0, %v734
        %736 = vmatmul.bf16.gmra.mxu0 %v648
        %v737 = vpop.f32.mrf.mxu0
        %v738 = vadd.f32 0.0, %v737
        %v739 = vpop.f32.mrf.mxu0
        %v740 = vadd.f32 0.0, %v739
        %741 = vmatmul.bf16.gmra.mxu0 %v649
        %v742 = vpop.f32.mrf.mxu0
        %v743 = vadd.f32 0.0, %v742
        %v744 = vpop.f32.mrf.mxu0
        %v745 = vadd.f32 0.0, %v744
        %746 = vmatmul.bf16.gmra.mxu0 %v650
        %v747 = vpop.f32.mrf.mxu0
        %v748 = vadd.f32 0.0, %v747
        %v749 = vpop.f32.mrf.mxu0
        %v750 = vadd.f32 0.0, %v749
        %751 = vmatmul.bf16.gmra.mxu0 %v651
        %v752 = vpop.f32.mrf.mxu0
        %v753 = vadd.f32 0.0, %v752
        %v754 = vpop.f32.mrf.mxu0
        %v755 = vadd.f32 0.0, %v754
        %756 = vdwg.mxu0
        %v773 = vunpack.c.l.b16 %v371
        %v774 = vunpack.c.l.b16 %v372
        %v775 = vunpack.c.l.b16 %v373
        %v776 = vunpack.c.l.b16 %v374
        %v777 = vunpack.c.l.b16 %v375
        %v778 = vunpack.c.l.b16 %v376
        %v779 = vunpack.c.l.b16 %v377
        %v780 = vunpack.c.l.b16 %v378
        %v781 = vunpack.c.l.b16 %v379
        %v782 = vunpack.c.l.b16 %v380
        %v783 = vunpack.c.l.b16 %v381
        %v784 = vunpack.c.l.b16 %v382
        %v785 = vunpack.c.l.b16 %v383
        %v786 = vunpack.c.l.b16 %v384
        %v787 = vunpack.c.l.b16 %v385
        %v788 = vunpack.c.l.b16 %v386
        %v789 = vpack.c.b16 %v774, %v773
        %v790 = vpack.c.b16 %v776, %v775
        %v791 = vpack.c.b16 %v778, %v777
        %v792 = vpack.c.b16 %v780, %v779
        %v793 = vpack.c.b16 %v782, %v781
        %v794 = vpack.c.b16 %v784, %v783
        %v795 = vpack.c.b16 %v786, %v785
        %v796 = vpack.c.b16 %v788, %v787
        %v821 = vunpack.c.l.b16 %v435
        %v822 = vunpack.c.l.b16 %v436
        %v823 = vunpack.c.l.b16 %v437
        %v824 = vunpack.c.l.b16 %v438
        %v825 = vunpack.c.l.b16 %v439
        %v826 = vunpack.c.l.b16 %v440
        %v827 = vunpack.c.l.b16 %v441
        %v828 = vunpack.c.l.b16 %v442
        %v829 = vunpack.c.l.b16 %v443
        %v830 = vunpack.c.l.b16 %v444
        %v831 = vunpack.c.l.b16 %v445
        %v832 = vunpack.c.l.b16 %v446
        %v833 = vunpack.c.l.b16 %v447
        %v834 = vunpack.c.l.b16 %v448
        %v835 = vunpack.c.l.b16 %v449
        %v836 = vunpack.c.l.b16 %v450
        %v837 = vpack.c.b16 %v822, %v821
        %v838 = vpack.c.b16 %v824, %v823
        %v839 = vpack.c.b16 %v826, %v825
        %v840 = vpack.c.b16 %v828, %v827
        %v841 = vpack.c.b16 %v830, %v829
        %v842 = vpack.c.b16 %v832, %v831
        %v843 = vpack.c.b16 %v834, %v833
        %v844 = vpack.c.b16 %v836, %v835
        %853 = vmatpush.bf16.xpose.msra.mxu0 %v844
        %854 = vmatpush.bf16.xpose.msra.mxu0 %v843
        %855 = vmatpush.bf16.xpose.msra.mxu0 %v842
        %856 = vmatpush.bf16.xpose.msra.mxu0 %v841
        %857 = vmatpush.bf16.xpose.msra.mxu0 %v840
        %858 = vmatpush.bf16.xpose.msra.mxu0 %v839
        %859 = vmatpush.bf16.xpose.msra.mxu0 %v838
        %860 = vmatpush.bf16.xpose.msra.mxu0 %v837
        %861 = vmatmul.bf16.gmra.mxu0 %v789
        %v862 = vpop.f32.mrf.mxu0
        %v863 = vadd.f32 0.0, %v862
        %v864 = vpop.f32.mrf.mxu0
        %v865 = vadd.f32 0.0, %v864
        %866 = vmatmul.bf16.gmra.mxu0 %v790
        %v867 = vpop.f32.mrf.mxu0
        %v868 = vadd.f32 0.0, %v867
        %v869 = vpop.f32.mrf.mxu0
        %v870 = vadd.f32 0.0, %v869
        %871 = vmatmul.bf16.gmra.mxu0 %v791
        %v872 = vpop.f32.mrf.mxu0
        %v873 = vadd.f32 0.0, %v872
        %v874 = vpop.f32.mrf.mxu0
        %v875 = vadd.f32 0.0, %v874
        %876 = vmatmul.bf16.gmra.mxu0 %v792
        %v877 = vpop.f32.mrf.mxu0
        %v878 = vadd.f32 0.0, %v877
        %v879 = vpop.f32.mrf.mxu0
        %v880 = vadd.f32 0.0, %v879
        %881 = vmatmul.bf16.gmra.mxu0 %v793
        %v882 = vpop.f32.mrf.mxu0
        %v883 = vadd.f32 0.0, %v882
        %v884 = vpop.f32.mrf.mxu0
        %v885 = vadd.f32 0.0, %v884
        %886 = vmatmul.bf16.gmra.mxu0 %v794
        %v887 = vpop.f32.mrf.mxu0
        %v888 = vadd.f32 0.0, %v887
        %v889 = vpop.f32.mrf.mxu0
        %v890 = vadd.f32 0.0, %v889
        %891 = vmatmul.bf16.gmra.mxu0 %v795
        %v892 = vpop.f32.mrf.mxu0
        %v893 = vadd.f32 0.0, %v892
        %v894 = vpop.f32.mrf.mxu0
        %v895 = vadd.f32 0.0, %v894
        %896 = vmatmul.bf16.gmra.mxu0 %v796
        %v897 = vpop.f32.mrf.mxu0
        %v898 = vadd.f32 0.0, %v897
        %v899 = vpop.f32.mrf.mxu0
        %v900 = vadd.f32 0.0, %v899
        %901 = vdwg.mxu0
        %v918 = vunpack.c.l.b16 %v387
        %v919 = vunpack.c.l.b16 %v388
        %v920 = vunpack.c.l.b16 %v389
        %v921 = vunpack.c.l.b16 %v390
        %v922 = vunpack.c.l.b16 %v391
        %v923 = vunpack.c.l.b16 %v392
        %v924 = vunpack.c.l.b16 %v393
        %v925 = vunpack.c.l.b16 %v394
        %v926 = vunpack.c.l.b16 %v395
        %v927 = vunpack.c.l.b16 %v396
        %v928 = vunpack.c.l.b16 %v397
        %v929 = vunpack.c.l.b16 %v398
        %v930 = vunpack.c.l.b16 %v399
        %v931 = vunpack.c.l.b16 %v400
        %v932 = vunpack.c.l.b16 %v401
        %v933 = vunpack.c.l.b16 %v402
        %v934 = vpack.c.b16 %v919, %v918
        %v935 = vpack.c.b16 %v921, %v920
        %v936 = vpack.c.b16 %v923, %v922
        %v937 = vpack.c.b16 %v925, %v924
        %v938 = vpack.c.b16 %v927, %v926
        %v939 = vpack.c.b16 %v929, %v928
        %v940 = vpack.c.b16 %v931, %v930
        %v941 = vpack.c.b16 %v933, %v932
        %v966 = vunpack.c.l.b16 %v451
        %v967 = vunpack.c.l.b16 %v452
        %v968 = vunpack.c.l.b16 %v453
        %v969 = vunpack.c.l.b16 %v454
        %v970 = vunpack.c.l.b16 %v455
        %v971 = vunpack.c.l.b16 %v456
        %v972 = vunpack.c.l.b16 %v457
        %v973 = vunpack.c.l.b16 %v458
        %v974 = vunpack.c.l.b16 %v459
        %v975 = vunpack.c.l.b16 %v460
        %v976 = vunpack.c.l.b16 %v461
        %v977 = vunpack.c.l.b16 %v462
        %v978 = vunpack.c.l.b16 %v463
        %v979 = vunpack.c.l.b16 %v464
        %v980 = vunpack.c.l.b16 %v465
        %v981 = vunpack.c.l.b16 %v466
        %v982 = vpack.c.b16 %v967, %v966
        %v983 = vpack.c.b16 %v969, %v968
        %v984 = vpack.c.b16 %v971, %v970
        %v985 = vpack.c.b16 %v973, %v972
        %v986 = vpack.c.b16 %v975, %v974
        %v987 = vpack.c.b16 %v977, %v976
        %v988 = vpack.c.b16 %v979, %v978
        %v989 = vpack.c.b16 %v981, %v980
        %998 = vmatpush.bf16.xpose.msra.mxu0 %v989
        %999 = vmatpush.bf16.xpose.msra.mxu0 %v988
        %1000 = vmatpush.bf16.xpose.msra.mxu0 %v987
        %1001 = vmatpush.bf16.xpose.msra.mxu0 %v986
        %1002 = vmatpush.bf16.xpose.msra.mxu0 %v985
        %1003 = vmatpush.bf16.xpose.msra.mxu0 %v984
        %1004 = vmatpush.bf16.xpose.msra.mxu0 %v983
        %1005 = vmatpush.bf16.xpose.msra.mxu0 %v982
        %1006 = vmatmul.bf16.gmra.mxu0 %v934
        %v1007 = vpop.f32.mrf.mxu0
        %v1008 = vadd.f32 0.0, %v1007
        %v1009 = vpop.f32.mrf.mxu0
        %v1010 = vadd.f32 0.0, %v1009
        %1011 = vmatmul.bf16.gmra.mxu0 %v935
        %v1012 = vpop.f32.mrf.mxu0
        %v1013 = vadd.f32 0.0, %v1012
        %v1014 = vpop.f32.mrf.mxu0
        %v1015 = vadd.f32 0.0, %v1014
        %1016 = vmatmul.bf16.gmra.mxu0 %v936
        %v1017 = vpop.f32.mrf.mxu0
        %v1018 = vadd.f32 0.0, %v1017
        %v1019 = vpop.f32.mrf.mxu0
        %v1020 = vadd.f32 0.0, %v1019
        %1021 = vmatmul.bf16.gmra.mxu0 %v937
        %v1022 = vpop.f32.mrf.mxu0
        %v1023 = vadd.f32 0.0, %v1022
        %v1024 = vpop.f32.mrf.mxu0
        %v1025 = vadd.f32 0.0, %v1024
        %1026 = vmatmul.bf16.gmra.mxu0 %v938
        %v1027 = vpop.f32.mrf.mxu0
        %v1028 = vadd.f32 0.0, %v1027
        %v1029 = vpop.f32.mrf.mxu0
        %v1030 = vadd.f32 0.0, %v1029
        %1031 = vmatmul.bf16.gmra.mxu0 %v939
        %v1032 = vpop.f32.mrf.mxu0
        %v1033 = vadd.f32 0.0, %v1032
        %v1034 = vpop.f32.mrf.mxu0
        %v1035 = vadd.f32 0.0, %v1034
        %1036 = vmatmul.bf16.gmra.mxu0 %v940
        %v1037 = vpop.f32.mrf.mxu0
        %v1038 = vadd.f32 0.0, %v1037
        %v1039 = vpop.f32.mrf.mxu0
        %v1040 = vadd.f32 0.0, %v1039
        %1041 = vmatmul.bf16.gmra.mxu0 %v941
        %v1042 = vpop.f32.mrf.mxu0
        %v1043 = vadd.f32 0.0, %v1042
        %v1044 = vpop.f32.mrf.mxu0
        %v1045 = vadd.f32 0.0, %v1044
        %1046 = vdwg.mxu0
        %1047 = vmax.xlane.f32.xlu0 %v573
        %v1048 = vpop.xlane.xlu0 %1047
        %1049 = vmax.xlane.f32.xlu0 %v575
        %v1050 = vpop.xlane.xlu0 %1049
        %1051 = vmax.xlane.f32.xlu0 %v578
        %v1052 = vpop.xlane.xlu0 %1051
        %1053 = vmax.xlane.f32.xlu0 %v580
        %v1054 = vpop.xlane.xlu0 %1053
        %1055 = vmax.xlane.f32.xlu0 %v583
        %v1056 = vpop.xlane.xlu0 %1055
        %1057 = vmax.xlane.f32.xlu0 %v585
        %v1058 = vpop.xlane.xlu0 %1057
        %1059 = vmax.xlane.f32.xlu0 %v588
        %v1060 = vpop.xlane.xlu0 %1059
        %1061 = vmax.xlane.f32.xlu0 %v590
        %v1062 = vpop.xlane.xlu0 %1061
        %1063 = vmax.xlane.f32.xlu0 %v593
        %v1064 = vpop.xlane.xlu0 %1063
        %1065 = vmax.xlane.f32.xlu0 %v595
        %v1066 = vpop.xlane.xlu0 %1065
        %1067 = vmax.xlane.f32.xlu0 %v598
        %v1068 = vpop.xlane.xlu0 %1067
        %1069 = vmax.xlane.f32.xlu0 %v600
        %v1070 = vpop.xlane.xlu0 %1069
        %1071 = vmax.xlane.f32.xlu0 %v603
        %v1072 = vpop.xlane.xlu0 %1071
        %1073 = vmax.xlane.f32.xlu0 %v605
        %v1074 = vpop.xlane.xlu0 %1073
        %1075 = vmax.xlane.f32.xlu0 %v608
        %v1076 = vpop.xlane.xlu0 %1075
        %1077 = vmax.xlane.f32.xlu0 %v610
        %v1078 = vpop.xlane.xlu0 %1077
        %1079 = vmax.xlane.f32.xlu0 %v718
        %v1080 = vpop.xlane.xlu0 %1079
        %1081 = vmax.xlane.f32.xlu0 %v720
        %v1082 = vpop.xlane.xlu0 %1081
        %1083 = vmax.xlane.f32.xlu0 %v723
        %v1084 = vpop.xlane.xlu0 %1083
        %1085 = vmax.xlane.f32.xlu0 %v725
        %v1086 = vpop.xlane.xlu0 %1085
        %1087 = vmax.xlane.f32.xlu0 %v728
        %v1088 = vpop.xlane.xlu0 %1087
        %1089 = vmax.xlane.f32.xlu0 %v730
        %v1090 = vpop.xlane.xlu0 %1089
        %1091 = vmax.xlane.f32.xlu0 %v733
        %v1092 = vpop.xlane.xlu0 %1091
        %1093 = vmax.xlane.f32.xlu0 %v735
        %v1094 = vpop.xlane.xlu0 %1093
        %1095 = vmax.xlane.f32.xlu0 %v738
        %v1096 = vpop.xlane.xlu0 %1095
        %1097 = vmax.xlane.f32.xlu0 %v740
        %v1098 = vpop.xlane.xlu0 %1097
        %1099 = vmax.xlane.f32.xlu0 %v743
        %v1100 = vpop.xlane.xlu0 %1099
        %1101 = vmax.xlane.f32.xlu0 %v745
        %v1102 = vpop.xlane.xlu0 %1101
        %1103 = vmax.xlane.f32.xlu0 %v748
        %v1104 = vpop.xlane.xlu0 %1103
        %1105 = vmax.xlane.f32.xlu0 %v750
        %v1106 = vpop.xlane.xlu0 %1105
        %1107 = vmax.xlane.f32.xlu0 %v753
        %v1108 = vpop.xlane.xlu0 %1107
        %1109 = vmax.xlane.f32.xlu0 %v755
        %v1110 = vpop.xlane.xlu0 %1109
        %1111 = vmax.xlane.f32.xlu0 %v863
        %v1112 = vpop.xlane.xlu0 %1111
        %1113 = vmax.xlane.f32.xlu0 %v865
        %v1114 = vpop.xlane.xlu0 %1113
        %1115 = vmax.xlane.f32.xlu0 %v868
        %v1116 = vpop.xlane.xlu0 %1115
        %1117 = vmax.xlane.f32.xlu0 %v870
        %v1118 = vpop.xlane.xlu0 %1117
        %1119 = vmax.xlane.f32.xlu0 %v873
        %v1120 = vpop.xlane.xlu0 %1119
        %1121 = vmax.xlane.f32.xlu0 %v875
        %v1122 = vpop.xlane.xlu0 %1121
        %1123 = vmax.xlane.f32.xlu0 %v878
        %v1124 = vpop.xlane.xlu0 %1123
        %1125 = vmax.xlane.f32.xlu0 %v880
        %v1126 = vpop.xlane.xlu0 %1125
        %1127 = vmax.xlane.f32.xlu0 %v883
        %v1128 = vpop.xlane.xlu0 %1127
        %1129 = vmax.xlane.f32.xlu0 %v885
        %v1130 = vpop.xlane.xlu0 %1129
        %1131 = vmax.xlane.f32.xlu0 %v888
        %v1132 = vpop.xlane.xlu0 %1131
        %1133 = vmax.xlane.f32.xlu0 %v890
        %v1134 = vpop.xlane.xlu0 %1133
        %1135 = vmax.xlane.f32.xlu0 %v893
        %v1136 = vpop.xlane.xlu0 %1135
        %1137 = vmax.xlane.f32.xlu0 %v895
        %v1138 = vpop.xlane.xlu0 %1137
        %1139 = vmax.xlane.f32.xlu0 %v898
        %v1140 = vpop.xlane.xlu0 %1139
        %1141 = vmax.xlane.f32.xlu0 %v900
        %v1142 = vpop.xlane.xlu0 %1141
        %1143 = vmax.xlane.f32.xlu0 %v1008
        %v1144 = vpop.xlane.xlu0 %1143
        %1145 = vmax.xlane.f32.xlu0 %v1010
        %v1146 = vpop.xlane.xlu0 %1145
        %1147 = vmax.xlane.f32.xlu0 %v1013
        %v1148 = vpop.xlane.xlu0 %1147
        %1149 = vmax.xlane.f32.xlu0 %v1015
        %v1150 = vpop.xlane.xlu0 %1149
        %1151 = vmax.xlane.f32.xlu0 %v1018
        %v1152 = vpop.xlane.xlu0 %1151
        %1153 = vmax.xlane.f32.xlu0 %v1020
        %v1154 = vpop.xlane.xlu0 %1153
        %1155 = vmax.xlane.f32.xlu0 %v1023
        %v1156 = vpop.xlane.xlu0 %1155
        %1157 = vmax.xlane.f32.xlu0 %v1025
        %v1158 = vpop.xlane.xlu0 %1157
        %1159 = vmax.xlane.f32.xlu0 %v1028
        %v1160 = vpop.xlane.xlu0 %1159
        %1161 = vmax.xlane.f32.xlu0 %v1030
        %v1162 = vpop.xlane.xlu0 %1161
        %1163 = vmax.xlane.f32.xlu0 %v1033
        %v1164 = vpop.xlane.xlu0 %1163
        %1165 = vmax.xlane.f32.xlu0 %v1035
        %v1166 = vpop.xlane.xlu0 %1165
        %1167 = vmax.xlane.f32.xlu0 %v1038
        %v1168 = vpop.xlane.xlu0 %1167
        %1169 = vmax.xlane.f32.xlu0 %v1040
        %v1170 = vpop.xlane.xlu0 %1169
        %1171 = vmax.xlane.f32.xlu0 %v1043
        %v1172 = vpop.xlane.xlu0 %1171
        %1173 = vmax.xlane.f32.xlu0 %v1045
        %v1174 = vpop.xlane.xlu0 %1173
        %v1175 = vsub.f32 %v573, %v1048
        %v1176 = vsub.f32 %v575, %v1050
        %v1177 = vsub.f32 %v578, %v1052
        %v1178 = vsub.f32 %v580, %v1054
        %v1179 = vsub.f32 %v583, %v1056
        %v1180 = vsub.f32 %v585, %v1058
        %v1181 = vsub.f32 %v588, %v1060
        %v1182 = vsub.f32 %v590, %v1062
        %v1183 = vsub.f32 %v593, %v1064
        %v1184 = vsub.f32 %v595, %v1066
        %v1185 = vsub.f32 %v598, %v1068
        %v1186 = vsub.f32 %v600, %v1070
        %v1187 = vsub.f32 %v603, %v1072
        %v1188 = vsub.f32 %v605, %v1074
        %v1189 = vsub.f32 %v608, %v1076
        %v1190 = vsub.f32 %v610, %v1078
        %v1191 = vsub.f32 %v718, %v1080
        %v1192 = vsub.f32 %v720, %v1082
        %v1193 = vsub.f32 %v723, %v1084
        %v1194 = vsub.f32 %v725, %v1086
        %v1195 = vsub.f32 %v728, %v1088
        %v1196 = vsub.f32 %v730, %v1090
        %v1197 = vsub.f32 %v733, %v1092
        %v1198 = vsub.f32 %v735, %v1094
        %v1199 = vsub.f32 %v738, %v1096
        %v1200 = vsub.f32 %v740, %v1098
        %v1201 = vsub.f32 %v743, %v1100
        %v1202 = vsub.f32 %v745, %v1102
        %v1203 = vsub.f32 %v748, %v1104
        %v1204 = vsub.f32 %v750, %v1106
        %v1205 = vsub.f32 %v753, %v1108
        %v1206 = vsub.f32 %v755, %v1110
        %v1207 = vsub.f32 %v863, %v1112
        %v1208 = vsub.f32 %v865, %v1114
        %v1209 = vsub.f32 %v868, %v1116
        %v1210 = vsub.f32 %v870, %v1118
        %v1211 = vsub.f32 %v873, %v1120
        %v1212 = vsub.f32 %v875, %v1122
        %v1213 = vsub.f32 %v878, %v1124
        %v1214 = vsub.f32 %v880, %v1126
        %v1215 = vsub.f32 %v883, %v1128
        %v1216 = vsub.f32 %v885, %v1130
        %v1217 = vsub.f32 %v888, %v1132
        %v1218 = vsub.f32 %v890, %v1134
        %v1219 = vsub.f32 %v893, %v1136
        %v1220 = vsub.f32 %v895, %v1138
        %v1221 = vsub.f32 %v898, %v1140
        %v1222 = vsub.f32 %v900, %v1142
        %v1223 = vsub.f32 %v1008, %v1144
        %v1224 = vsub.f32 %v1010, %v1146
        %v1225 = vsub.f32 %v1013, %v1148
        %v1226 = vsub.f32 %v1015, %v1150
        %v1227 = vsub.f32 %v1018, %v1152
        %v1228 = vsub.f32 %v1020, %v1154
        %v1229 = vsub.f32 %v1023, %v1156
        %v1230 = vsub.f32 %v1025, %v1158
        %v1231 = vsub.f32 %v1028, %v1160
        %v1232 = vsub.f32 %v1030, %v1162
        %v1233 = vsub.f32 %v1033, %v1164
        %v1234 = vsub.f32 %v1035, %v1166
        %v1235 = vsub.f32 %v1038, %v1168
        %v1236 = vsub.f32 %v1040, %v1170
        %v1237 = vsub.f32 %v1043, %v1172
        %v1238 = vsub.f32 %v1045, %v1174
        %v1239 = vmul.f32 %v1175, 1.442695
        %v1240 = vpow.pop %v1239
        %v1241 = vmul.f32 %v1176, 1.442695
        %v1242 = vpow.pop %v1241
        %v1243 = vmul.f32 %v1177, 1.442695
        %v1244 = vpow.pop %v1243
        %v1245 = vmul.f32 %v1178, 1.442695
        %v1246 = vpow.pop %v1245
        %v1247 = vmul.f32 %v1179, 1.442695
        %v1248 = vpow.pop %v1247
        %v1249 = vmul.f32 %v1180, 1.442695
        %v1250 = vpow.pop %v1249
        %v1251 = vmul.f32 %v1181, 1.442695
        %v1252 = vpow.pop %v1251
        %v1253 = vmul.f32 %v1182, 1.442695
        %v1254 = vpow.pop %v1253
        %v1255 = vmul.f32 %v1183, 1.442695
        %v1256 = vpow.pop %v1255
        %v1257 = vmul.f32 %v1184, 1.442695
        %v1258 = vpow.pop %v1257
        %v1259 = vmul.f32 %v1185, 1.442695
        %v1260 = vpow.pop %v1259
        %v1261 = vmul.f32 %v1186, 1.442695
        %v1262 = vpow.pop %v1261
        %v1263 = vmul.f32 %v1187, 1.442695
        %v1264 = vpow.pop %v1263
        %v1265 = vmul.f32 %v1188, 1.442695
        %v1266 = vpow.pop %v1265
        %v1267 = vmul.f32 %v1189, 1.442695
        %v1268 = vpow.pop %v1267
        %v1269 = vmul.f32 %v1190, 1.442695
        %v1270 = vpow.pop %v1269
        %v1271 = vmul.f32 %v1191, 1.442695
        %v1272 = vpow.pop %v1271
        %v1273 = vmul.f32 %v1192, 1.442695
        %v1274 = vpow.pop %v1273
        %v1275 = vmul.f32 %v1193, 1.442695
        %v1276 = vpow.pop %v1275
        %v1277 = vmul.f32 %v1194, 1.442695
        %v1278 = vpow.pop %v1277
        %v1279 = vmul.f32 %v1195, 1.442695
        %v1280 = vpow.pop %v1279
        %v1281 = vmul.f32 %v1196, 1.442695
        %v1282 = vpow.pop %v1281
        %v1283 = vmul.f32 %v1197, 1.442695
        %v1284 = vpow.pop %v1283
        %v1285 = vmul.f32 %v1198, 1.442695
        %v1286 = vpow.pop %v1285
        %v1287 = vmul.f32 %v1199, 1.442695
        %v1288 = vpow.pop %v1287
        %v1289 = vmul.f32 %v1200, 1.442695
        %v1290 = vpow.pop %v1289
        %v1291 = vmul.f32 %v1201, 1.442695
        %v1292 = vpow.pop %v1291
        %v1293 = vmul.f32 %v1202, 1.442695
        %v1294 = vpow.pop %v1293
        %v1295 = vmul.f32 %v1203, 1.442695
        %v1296 = vpow.pop %v1295
        %v1297 = vmul.f32 %v1204, 1.442695
        %v1298 = vpow.pop %v1297
        %v1299 = vmul.f32 %v1205, 1.442695
        %v1300 = vpow.pop %v1299
        %v1301 = vmul.f32 %v1206, 1.442695
        %v1302 = vpow.pop %v1301
        %v1303 = vmul.f32 %v1207, 1.442695
        %v1304 = vpow.pop %v1303
        %v1305 = vmul.f32 %v1208, 1.442695
        %v1306 = vpow.pop %v1305
        %v1307 = vmul.f32 %v1209, 1.442695
        %v1308 = vpow.pop %v1307
        %v1309 = vmul.f32 %v1210, 1.442695
        %v1310 = vpow.pop %v1309
        %v1311 = vmul.f32 %v1211, 1.442695
        %v1312 = vpow.pop %v1311
        %v1313 = vmul.f32 %v1212, 1.442695
        %v1314 = vpow.pop %v1313
        %v1315 = vmul.f32 %v1213, 1.442695
        %v1316 = vpow.pop %v1315
        %v1317 = vmul.f32 %v1214, 1.442695
        %v1318 = vpow.pop %v1317
        %v1319 = vmul.f32 %v1215, 1.442695
        %v1320 = vpow.pop %v1319
        %v1321 = vmul.f32 %v1216, 1.442695
        %v1322 = vpow.pop %v1321
        %v1323 = vmul.f32 %v1217, 1.442695
        %v1324 = vpow.pop %v1323
        %v1325 = vmul.f32 %v1218, 1.442695
        %v1326 = vpow.pop %v1325
        %v1327 = vmul.f32 %v1219, 1.442695
        %v1328 = vpow.pop %v1327
        %v1329 = vmul.f32 %v1220, 1.442695
        %v1330 = vpow.pop %v1329
        %v1331 = vmul.f32 %v1221, 1.442695
        %v1332 = vpow.pop %v1331
        %v1333 = vmul.f32 %v1222, 1.442695
        %v1334 = vpow.pop %v1333
        %v1335 = vmul.f32 %v1223, 1.442695
        %v1336 = vpow.pop %v1335
        %v1337 = vmul.f32 %v1224, 1.442695
        %v1338 = vpow.pop %v1337
        %v1339 = vmul.f32 %v1225, 1.442695
        %v1340 = vpow.pop %v1339
        %v1341 = vmul.f32 %v1226, 1.442695
        %v1342 = vpow.pop %v1341
        %v1343 = vmul.f32 %v1227, 1.442695
        %v1344 = vpow.pop %v1343
        %v1345 = vmul.f32 %v1228, 1.442695
        %v1346 = vpow.pop %v1345
        %v1347 = vmul.f32 %v1229, 1.442695
        %v1348 = vpow.pop %v1347
        %v1349 = vmul.f32 %v1230, 1.442695
        %v1350 = vpow.pop %v1349
        %v1351 = vmul.f32 %v1231, 1.442695
        %v1352 = vpow.pop %v1351
        %v1353 = vmul.f32 %v1232, 1.442695
        %v1354 = vpow.pop %v1353
        %v1355 = vmul.f32 %v1233, 1.442695
        %v1356 = vpow.pop %v1355
        %v1357 = vmul.f32 %v1234, 1.442695
        %v1358 = vpow.pop %v1357
        %v1359 = vmul.f32 %v1235, 1.442695
        %v1360 = vpow.pop %v1359
        %v1361 = vmul.f32 %v1236, 1.442695
        %v1362 = vpow.pop %v1361
        %v1363 = vmul.f32 %v1237, 1.442695
        %v1364 = vpow.pop %v1363
        %v1365 = vmul.f32 %v1238, 1.442695
        %v1366 = vpow.pop %v1365
        %1367 = vadd.xlane.f32.xlu0 %v1240
        %v1368 = vpop.xlane.xlu0 %1367
        %1369 = vadd.xlane.f32.xlu0 %v1242
        %v1370 = vpop.xlane.xlu0 %1369
        %1371 = vadd.xlane.f32.xlu0 %v1244
        %v1372 = vpop.xlane.xlu0 %1371
        %1373 = vadd.xlane.f32.xlu0 %v1246
        %v1374 = vpop.xlane.xlu0 %1373
        %1375 = vadd.xlane.f32.xlu0 %v1248
        %v1376 = vpop.xlane.xlu0 %1375
        %1377 = vadd.xlane.f32.xlu0 %v1250
        %v1378 = vpop.xlane.xlu0 %1377
        %1379 = vadd.xlane.f32.xlu0 %v1252
        %v1380 = vpop.xlane.xlu0 %1379
        %1381 = vadd.xlane.f32.xlu0 %v1254
        %v1382 = vpop.xlane.xlu0 %1381
        %1383 = vadd.xlane.f32.xlu0 %v1256
        %v1384 = vpop.xlane.xlu0 %1383
        %1385 = vadd.xlane.f32.xlu0 %v1258
        %v1386 = vpop.xlane.xlu0 %1385
        %1387 = vadd.xlane.f32.xlu0 %v1260
        %v1388 = vpop.xlane.xlu0 %1387
        %1389 = vadd.xlane.f32.xlu0 %v1262
        %v1390 = vpop.xlane.xlu0 %1389
        %1391 = vadd.xlane.f32.xlu0 %v1264
        %v1392 = vpop.xlane.xlu0 %1391
        %1393 = vadd.xlane.f32.xlu0 %v1266
        %v1394 = vpop.xlane.xlu0 %1393
        %1395 = vadd.xlane.f32.xlu0 %v1268
        %v1396 = vpop.xlane.xlu0 %1395
        %1397 = vadd.xlane.f32.xlu0 %v1270
        %v1398 = vpop.xlane.xlu0 %1397
        %1399 = vadd.xlane.f32.xlu0 %v1272
        %v1400 = vpop.xlane.xlu0 %1399
        %1401 = vadd.xlane.f32.xlu0 %v1274
        %v1402 = vpop.xlane.xlu0 %1401
        %1403 = vadd.xlane.f32.xlu0 %v1276
        %v1404 = vpop.xlane.xlu0 %1403
        %1405 = vadd.xlane.f32.xlu0 %v1278
        %v1406 = vpop.xlane.xlu0 %1405
        %1407 = vadd.xlane.f32.xlu0 %v1280
        %v1408 = vpop.xlane.xlu0 %1407
        %1409 = vadd.xlane.f32.xlu0 %v1282
        %v1410 = vpop.xlane.xlu0 %1409
        %1411 = vadd.xlane.f32.xlu0 %v1284
        %v1412 = vpop.xlane.xlu0 %1411
        %1413 = vadd.xlane.f32.xlu0 %v1286
        %v1414 = vpop.xlane.xlu0 %1413
        %1415 = vadd.xlane.f32.xlu0 %v1288
        %v1416 = vpop.xlane.xlu0 %1415
        %1417 = vadd.xlane.f32.xlu0 %v1290
        %v1418 = vpop.xlane.xlu0 %1417
        %1419 = vadd.xlane.f32.xlu0 %v1292
        %v1420 = vpop.xlane.xlu0 %1419
        %1421 = vadd.xlane.f32.xlu0 %v1294
        %v1422 = vpop.xlane.xlu0 %1421
        %1423 = vadd.xlane.f32.xlu0 %v1296
        %v1424 = vpop.xlane.xlu0 %1423
        %1425 = vadd.xlane.f32.xlu0 %v1298
        %v1426 = vpop.xlane.xlu0 %1425
        %1427 = vadd.xlane.f32.xlu0 %v1300
        %v1428 = vpop.xlane.xlu0 %1427
        %1429 = vadd.xlane.f32.xlu0 %v1302
        %v1430 = vpop.xlane.xlu0 %1429
        %1431 = vadd.xlane.f32.xlu0 %v1304
        %v1432 = vpop.xlane.xlu0 %1431
        %1433 = vadd.xlane.f32.xlu0 %v1306
        %v1434 = vpop.xlane.xlu0 %1433
        %1435 = vadd.xlane.f32.xlu0 %v1308
        %v1436 = vpop.xlane.xlu0 %1435
        %1437 = vadd.xlane.f32.xlu0 %v1310
        %v1438 = vpop.xlane.xlu0 %1437
        %1439 = vadd.xlane.f32.xlu0 %v1312
        %v1440 = vpop.xlane.xlu0 %1439
        %1441 = vadd.xlane.f32.xlu0 %v1314
        %v1442 = vpop.xlane.xlu0 %1441
        %1443 = vadd.xlane.f32.xlu0 %v1316
        %v1444 = vpop.xlane.xlu0 %1443
        %1445 = vadd.xlane.f32.xlu0 %v1318
        %v1446 = vpop.xlane.xlu0 %1445
        %1447 = vadd.xlane.f32.xlu0 %v1320
        %v1448 = vpop.xlane.xlu0 %1447
        %1449 = vadd.xlane.f32.xlu0 %v1322
        %v1450 = vpop.xlane.xlu0 %1449
        %1451 = vadd.xlane.f32.xlu0 %v1324
        %v1452 = vpop.xlane.xlu0 %1451
        %1453 = vadd.xlane.f32.xlu0 %v1326
        %v1454 = vpop.xlane.xlu0 %1453
        %1455 = vadd.xlane.f32.xlu0 %v1328
        %v1456 = vpop.xlane.xlu0 %1455
        %1457 = vadd.xlane.f32.xlu0 %v1330
        %v1458 = vpop.xlane.xlu0 %1457
        %1459 = vadd.xlane.f32.xlu0 %v1332
        %v1460 = vpop.xlane.xlu0 %1459
        %1461 = vadd.xlane.f32.xlu0 %v1334
        %v1462 = vpop.xlane.xlu0 %1461
        %1463 = vadd.xlane.f32.xlu0 %v1336
        %v1464 = vpop.xlane.xlu0 %1463
        %1465 = vadd.xlane.f32.xlu0 %v1338
        %v1466 = vpop.xlane.xlu0 %1465
        %1467 = vadd.xlane.f32.xlu0 %v1340
        %v1468 = vpop.xlane.xlu0 %1467
        %1469 = vadd.xlane.f32.xlu0 %v1342
        %v1470 = vpop.xlane.xlu0 %1469
        %1471 = vadd.xlane.f32.xlu0 %v1344
        %v1472 = vpop.xlane.xlu0 %1471
        %1473 = vadd.xlane.f32.xlu0 %v1346
        %v1474 = vpop.xlane.xlu0 %1473
        %1475 = vadd.xlane.f32.xlu0 %v1348
        %v1476 = vpop.xlane.xlu0 %1475
        %1477 = vadd.xlane.f32.xlu0 %v1350
        %v1478 = vpop.xlane.xlu0 %1477
        %1479 = vadd.xlane.f32.xlu0 %v1352
        %v1480 = vpop.xlane.xlu0 %1479
        %1481 = vadd.xlane.f32.xlu0 %v1354
        %v1482 = vpop.xlane.xlu0 %1481
        %1483 = vadd.xlane.f32.xlu0 %v1356
        %v1484 = vpop.xlane.xlu0 %1483
        %1485 = vadd.xlane.f32.xlu0 %v1358
        %v1486 = vpop.xlane.xlu0 %1485
        %1487 = vadd.xlane.f32.xlu0 %v1360
        %v1488 = vpop.xlane.xlu0 %1487
        %1489 = vadd.xlane.f32.xlu0 %v1362
        %v1490 = vpop.xlane.xlu0 %1489
        %1491 = vadd.xlane.f32.xlu0 %v1364
        %v1492 = vpop.xlane.xlu0 %1491
        %1493 = vadd.xlane.f32.xlu0 %v1366
        %v1494 = vpop.xlane.xlu0 %1493
        %v1495 = vld [vmem:[%s181] sm:$0xff]
        %v1496 = vld [vmem:[%s181 + $0x8] sm:$0xff]
        %v1497 = vld [vmem:[%s181 + $0x10] sm:$0xff]
        %v1498 = vld [vmem:[%s181 + $0x18] sm:$0xff]
        %v1499 = vld [vmem:[%s181 + $0x20] sm:$0xff]
        %v1500 = vld [vmem:[%s181 + $0x28] sm:$0xff]
        %v1501 = vld [vmem:[%s181 + $0x30] sm:$0xff]
        %v1502 = vld [vmem:[%s181 + $0x38] sm:$0xff]
        %v1503 = vld [vmem:[%s181 + $0x40] sm:$0xff]
        %v1504 = vld [vmem:[%s181 + $0x48] sm:$0xff]
        %v1505 = vld [vmem:[%s181 + $0x50] sm:$0xff]
        %v1506 = vld [vmem:[%s181 + $0x58] sm:$0xff]
        %v1507 = vld [vmem:[%s181 + $0x60] sm:$0xff]
        %v1508 = vld [vmem:[%s181 + $0x68] sm:$0xff]
        %v1509 = vld [vmem:[%s181 + $0x70] sm:$0xff]
        %v1510 = vld [vmem:[%s181 + $0x78] sm:$0xff]
        %v1511 = vld [vmem:[%s181 + $0x80] sm:$0xff]
        %v1512 = vld [vmem:[%s181 + $0x88] sm:$0xff]
        %v1513 = vld [vmem:[%s181 + $0x90] sm:$0xff]
        %v1514 = vld [vmem:[%s181 + $0x98] sm:$0xff]
        %v1515 = vld [vmem:[%s181 + $0xa0] sm:$0xff]
        %v1516 = vld [vmem:[%s181 + $0xa8] sm:$0xff]
        %v1517 = vld [vmem:[%s181 + $0xb0] sm:$0xff]
        %v1518 = vld [vmem:[%s181 + $0xb8] sm:$0xff]
        %v1519 = vld [vmem:[%s181 + $0xc0] sm:$0xff]
        %v1520 = vld [vmem:[%s181 + $0xc8] sm:$0xff]
        %v1521 = vld [vmem:[%s181 + $0xd0] sm:$0xff]
        %v1522 = vld [vmem:[%s181 + $0xd8] sm:$0xff]
        %v1523 = vld [vmem:[%s181 + $0xe0] sm:$0xff]
        %v1524 = vld [vmem:[%s181 + $0xe8] sm:$0xff]
        %v1525 = vld [vmem:[%s181 + $0xf0] sm:$0xff]
        %v1526 = vld [vmem:[%s181 + $0xf8] sm:$0xff]
        %v1527 = vld [vmem:[%s181 + $0x100] sm:$0xff]
        %v1528 = vld [vmem:[%s181 + $0x108] sm:$0xff]
        %v1529 = vld [vmem:[%s181 + $0x110] sm:$0xff]
        %v1530 = vld [vmem:[%s181 + $0x118] sm:$0xff]
        %v1531 = vld [vmem:[%s181 + $0x120] sm:$0xff]
        %v1532 = vld [vmem:[%s181 + $0x128] sm:$0xff]
        %v1533 = vld [vmem:[%s181 + $0x130] sm:$0xff]
        %v1534 = vld [vmem:[%s181 + $0x138] sm:$0xff]
        %v1535 = vld [vmem:[%s181 + $0x140] sm:$0xff]
        %v1536 = vld [vmem:[%s181 + $0x148] sm:$0xff]
        %v1537 = vld [vmem:[%s181 + $0x150] sm:$0xff]
        %v1538 = vld [vmem:[%s181 + $0x158] sm:$0xff]
        %v1539 = vld [vmem:[%s181 + $0x160] sm:$0xff]
        %v1540 = vld [vmem:[%s181 + $0x168] sm:$0xff]
        %v1541 = vld [vmem:[%s181 + $0x170] sm:$0xff]
        %v1542 = vld [vmem:[%s181 + $0x178] sm:$0xff]
        %v1543 = vld [vmem:[%s181 + $0x180] sm:$0xff]
        %v1544 = vld [vmem:[%s181 + $0x188] sm:$0xff]
        %v1545 = vld [vmem:[%s181 + $0x190] sm:$0xff]
        %v1546 = vld [vmem:[%s181 + $0x198] sm:$0xff]
        %v1547 = vld [vmem:[%s181 + $0x1a0] sm:$0xff]
        %v1548 = vld [vmem:[%s181 + $0x1a8] sm:$0xff]
        %v1549 = vld [vmem:[%s181 + $0x1b0] sm:$0xff]
        %v1550 = vld [vmem:[%s181 + $0x1b8] sm:$0xff]
        %v1551 = vld [vmem:[%s181 + $0x1c0] sm:$0xff]
        %v1552 = vld [vmem:[%s181 + $0x1c8] sm:$0xff]
        %v1553 = vld [vmem:[%s181 + $0x1d0] sm:$0xff]
        %v1554 = vld [vmem:[%s181 + $0x1d8] sm:$0xff]
        %v1555 = vld [vmem:[%s181 + $0x1e0] sm:$0xff]
        %v1556 = vld [vmem:[%s181 + $0x1e8] sm:$0xff]
        %v1557 = vld [vmem:[%s181 + $0x1f0] sm:$0xff]
        %v1558 = vld [vmem:[%s181 + $0x1f8] sm:$0xff]
        %vm1559 = vcmp.ge.s32.totalorder %v1495, 0
        %vm1560 = vcmp.ge.s32.totalorder %v1496, 0
        %vm1561 = vcmp.ge.s32.totalorder %v1497, 0
        %vm1562 = vcmp.ge.s32.totalorder %v1498, 0
        %vm1563 = vcmp.ge.s32.totalorder %v1499, 0
        %vm1564 = vcmp.ge.s32.totalorder %v1500, 0
        %vm1565 = vcmp.ge.s32.totalorder %v1501, 0
        %vm1566 = vcmp.ge.s32.totalorder %v1502, 0
        %vm1567 = vcmp.ge.s32.totalorder %v1503, 0
        %vm1568 = vcmp.ge.s32.totalorder %v1504, 0
        %vm1569 = vcmp.ge.s32.totalorder %v1505, 0
        %vm1570 = vcmp.ge.s32.totalorder %v1506, 0
        %vm1571 = vcmp.ge.s32.totalorder %v1507, 0
        %vm1572 = vcmp.ge.s32.totalorder %v1508, 0
        %vm1573 = vcmp.ge.s32.totalorder %v1509, 0
        %vm1574 = vcmp.ge.s32.totalorder %v1510, 0
        %vm1575 = vcmp.ge.s32.totalorder %v1511, 0
        %vm1576 = vcmp.ge.s32.totalorder %v1512, 0
        %vm1577 = vcmp.ge.s32.totalorder %v1513, 0
        %vm1578 = vcmp.ge.s32.totalorder %v1514, 0
        %vm1579 = vcmp.ge.s32.totalorder %v1515, 0
        %vm1580 = vcmp.ge.s32.totalorder %v1516, 0
        %vm1581 = vcmp.ge.s32.totalorder %v1517, 0
        %vm1582 = vcmp.ge.s32.totalorder %v1518, 0
        %vm1583 = vcmp.ge.s32.totalorder %v1519, 0
        %vm1584 = vcmp.ge.s32.totalorder %v1520, 0
        %vm1585 = vcmp.ge.s32.totalorder %v1521, 0
        %vm1586 = vcmp.ge.s32.totalorder %v1522, 0
        %vm1587 = vcmp.ge.s32.totalorder %v1523, 0
        %vm1588 = vcmp.ge.s32.totalorder %v1524, 0
        %vm1589 = vcmp.ge.s32.totalorder %v1525, 0
        %vm1590 = vcmp.ge.s32.totalorder %v1526, 0
        %vm1591 = vcmp.ge.s32.totalorder %v1527, 0
        %vm1592 = vcmp.ge.s32.totalorder %v1528, 0
        %vm1593 = vcmp.ge.s32.totalorder %v1529, 0
        %vm1594 = vcmp.ge.s32.totalorder %v1530, 0
        %vm1595 = vcmp.ge.s32.totalorder %v1531, 0
        %vm1596 = vcmp.ge.s32.totalorder %v1532, 0
        %vm1597 = vcmp.ge.s32.totalorder %v1533, 0
        %vm1598 = vcmp.ge.s32.totalorder %v1534, 0
        %vm1599 = vcmp.ge.s32.totalorder %v1535, 0
        %vm1600 = vcmp.ge.s32.totalorder %v1536, 0
        %vm1601 = vcmp.ge.s32.totalorder %v1537, 0
        %vm1602 = vcmp.ge.s32.totalorder %v1538, 0
        %vm1603 = vcmp.ge.s32.totalorder %v1539, 0
        %vm1604 = vcmp.ge.s32.totalorder %v1540, 0
        %vm1605 = vcmp.ge.s32.totalorder %v1541, 0
        %vm1606 = vcmp.ge.s32.totalorder %v1542, 0
        %vm1607 = vcmp.ge.s32.totalorder %v1543, 0
        %vm1608 = vcmp.ge.s32.totalorder %v1544, 0
        %vm1609 = vcmp.ge.s32.totalorder %v1545, 0
        %vm1610 = vcmp.ge.s32.totalorder %v1546, 0
        %vm1611 = vcmp.ge.s32.totalorder %v1547, 0
        %vm1612 = vcmp.ge.s32.totalorder %v1548, 0
        %vm1613 = vcmp.ge.s32.totalorder %v1549, 0
        %vm1614 = vcmp.ge.s32.totalorder %v1550, 0
        %vm1615 = vcmp.ge.s32.totalorder %v1551, 0
        %vm1616 = vcmp.ge.s32.totalorder %v1552, 0
        %vm1617 = vcmp.ge.s32.totalorder %v1553, 0
        %vm1618 = vcmp.ge.s32.totalorder %v1554, 0
        %vm1619 = vcmp.ge.s32.totalorder %v1555, 0
        %vm1620 = vcmp.ge.s32.totalorder %v1556, 0
        %vm1621 = vcmp.ge.s32.totalorder %v1557, 0
        %vm1622 = vcmp.ge.s32.totalorder %v1558, 0
        %v1623 = vsel %vm1559, %v1240, 0.0
        %v1624 = vsel %vm1560, %v1242, 0.0
        %v1625 = vsel %vm1561, %v1244, 0.0
        %v1626 = vsel %vm1562, %v1246, 0.0
        %v1627 = vsel %vm1563, %v1248, 0.0
        %v1628 = vsel %vm1564, %v1250, 0.0
        %v1629 = vsel %vm1565, %v1252, 0.0
        %v1630 = vsel %vm1566, %v1254, 0.0
        %v1631 = vsel %vm1567, %v1256, 0.0
        %v1632 = vsel %vm1568, %v1258, 0.0
        %v1633 = vsel %vm1569, %v1260, 0.0
        %v1634 = vsel %vm1570, %v1262, 0.0
        %v1635 = vsel %vm1571, %v1264, 0.0
        %v1636 = vsel %vm1572, %v1266, 0.0
        %v1637 = vsel %vm1573, %v1268, 0.0
        %v1638 = vsel %vm1574, %v1270, 0.0
        %v1639 = vsel %vm1575, %v1272, 0.0
        %v1640 = vsel %vm1576, %v1274, 0.0
        %v1641 = vsel %vm1577, %v1276, 0.0
        %v1642 = vsel %vm1578, %v1278, 0.0
        %v1643 = vsel %vm1579, %v1280, 0.0
        %v1644 = vsel %vm1580, %v1282, 0.0
        %v1645 = vsel %vm1581, %v1284, 0.0
        %v1646 = vsel %vm1582, %v1286, 0.0
        %v1647 = vsel %vm1583, %v1288, 0.0
        %v1648 = vsel %vm1584, %v1290, 0.0
        %v1649 = vsel %vm1585, %v1292, 0.0
        %v1650 = vsel %vm1586, %v1294, 0.0
        %v1651 = vsel %vm1587, %v1296, 0.0
        %v1652 = vsel %vm1588, %v1298, 0.0
        %v1653 = vsel %vm1589, %v1300, 0.0
        %v1654 = vsel %vm1590, %v1302, 0.0
        %v1655 = vsel %vm1591, %v1304, 0.0
        %v1656 = vsel %vm1592, %v1306, 0.0
        %v1657 = vsel %vm1593, %v1308, 0.0
        %v1658 = vsel %vm1594, %v1310, 0.0
        %v1659 = vsel %vm1595, %v1312, 0.0
        %v1660 = vsel %vm1596, %v1314, 0.0
        %v1661 = vsel %vm1597, %v1316, 0.0
        %v1662 = vsel %vm1598, %v1318, 0.0
        %v1663 = vsel %vm1599, %v1320, 0.0
        %v1664 = vsel %vm1600, %v1322, 0.0
        %v1665 = vsel %vm1601, %v1324, 0.0
        %v1666 = vsel %vm1602, %v1326, 0.0
        %v1667 = vsel %vm1603, %v1328, 0.0
        %v1668 = vsel %vm1604, %v1330, 0.0
        %v1669 = vsel %vm1605, %v1332, 0.0
        %v1670 = vsel %vm1606, %v1334, 0.0
        %v1671 = vsel %vm1607, %v1336, 0.0
        %v1672 = vsel %vm1608, %v1338, 0.0
        %v1673 = vsel %vm1609, %v1340, 0.0
        %v1674 = vsel %vm1610, %v1342, 0.0
        %v1675 = vsel %vm1611, %v1344, 0.0
        %v1676 = vsel %vm1612, %v1346, 0.0
        %v1677 = vsel %vm1613, %v1348, 0.0
        %v1678 = vsel %vm1614, %v1350, 0.0
        %v1679 = vsel %vm1615, %v1352, 0.0
        %v1680 = vsel %vm1616, %v1354, 0.0
        %v1681 = vsel %vm1617, %v1356, 0.0
        %v1682 = vsel %vm1618, %v1358, 0.0
        %v1683 = vsel %vm1619, %v1360, 0.0
        %v1684 = vsel %vm1620, %v1362, 0.0
        %v1685 = vsel %vm1621, %v1364, 0.0
        %v1686 = vsel %vm1622, %v1366, 0.0
        %v1687 = vpack.c.bf16 %v1623, %v1623
        %v1688 = vpack.c.bf16 %v1624, %v1624
        %v1689 = vpack.c.bf16 %v1625, %v1625
        %v1690 = vpack.c.bf16 %v1626, %v1626
        %v1691 = vpack.c.bf16 %v1627, %v1627
        %v1692 = vpack.c.bf16 %v1628, %v1628
        %v1693 = vpack.c.bf16 %v1629, %v1629
        %v1694 = vpack.c.bf16 %v1630, %v1630
        %v1695 = vpack.c.bf16 %v1631, %v1631
        %v1696 = vpack.c.bf16 %v1632, %v1632
        %v1697 = vpack.c.bf16 %v1633, %v1633
        %v1698 = vpack.c.bf16 %v1634, %v1634
        %v1699 = vpack.c.bf16 %v1635, %v1635
        %v1700 = vpack.c.bf16 %v1636, %v1636
        %v1701 = vpack.c.bf16 %v1637, %v1637
        %v1702 = vpack.c.bf16 %v1638, %v1638
        %v1703 = vpack.c.bf16 %v1639, %v1639
        %v1704 = vpack.c.bf16 %v1640, %v1640
        %v1705 = vpack.c.bf16 %v1641, %v1641
        %v1706 = vpack.c.bf16 %v1642, %v1642
        %v1707 = vpack.c.bf16 %v1643, %v1643
        %v1708 = vpack.c.bf16 %v1644, %v1644
        %v1709 = vpack.c.bf16 %v1645, %v1645
        %v1710 = vpack.c.bf16 %v1646, %v1646
        %v1711 = vpack.c.bf16 %v1647, %v1647
        %v1712 = vpack.c.bf16 %v1648, %v1648
        %v1713 = vpack.c.bf16 %v1649, %v1649
        %v1714 = vpack.c.bf16 %v1650, %v1650
        %v1715 = vpack.c.bf16 %v1651, %v1651
        %v1716 = vpack.c.bf16 %v1652, %v1652
        %v1717 = vpack.c.bf16 %v1653, %v1653
        %v1718 = vpack.c.bf16 %v1654, %v1654
        %v1719 = vpack.c.bf16 %v1655, %v1655
        %v1720 = vpack.c.bf16 %v1656, %v1656
        %v1721 = vpack.c.bf16 %v1657, %v1657
        %v1722 = vpack.c.bf16 %v1658, %v1658
        %v1723 = vpack.c.bf16 %v1659, %v1659
        %v1724 = vpack.c.bf16 %v1660, %v1660
        %v1725 = vpack.c.bf16 %v1661, %v1661
        %v1726 = vpack.c.bf16 %v1662, %v1662
        %v1727 = vpack.c.bf16 %v1663, %v1663
        %v1728 = vpack.c.bf16 %v1664, %v1664
        %v1729 = vpack.c.bf16 %v1665, %v1665
        %v1730 = vpack.c.bf16 %v1666, %v1666
        %v1731 = vpack.c.bf16 %v1667, %v1667
        %v1732 = vpack.c.bf16 %v1668, %v1668
        %v1733 = vpack.c.bf16 %v1669, %v1669
        %v1734 = vpack.c.bf16 %v1670, %v1670
        %v1735 = vpack.c.bf16 %v1671, %v1671
        %v1736 = vpack.c.bf16 %v1672, %v1672
        %v1737 = vpack.c.bf16 %v1673, %v1673
        %v1738 = vpack.c.bf16 %v1674, %v1674
        %v1739 = vpack.c.bf16 %v1675, %v1675
        %v1740 = vpack.c.bf16 %v1676, %v1676
        %v1741 = vpack.c.bf16 %v1677, %v1677
        %v1742 = vpack.c.bf16 %v1678, %v1678
        %v1743 = vpack.c.bf16 %v1679, %v1679
        %v1744 = vpack.c.bf16 %v1680, %v1680
        %v1745 = vpack.c.bf16 %v1681, %v1681
        %v1746 = vpack.c.bf16 %v1682, %v1682
        %v1747 = vpack.c.bf16 %v1683, %v1683
        %v1748 = vpack.c.bf16 %v1684, %v1684
        %v1749 = vpack.c.bf16 %v1685, %v1685
        %v1750 = vpack.c.bf16 %v1686, %v1686
        %v1767 = vunpack.c.l.b16 %v1687
        %v1768 = vunpack.c.l.b16 %v1688
        %v1769 = vunpack.c.l.b16 %v1689
        %v1770 = vunpack.c.l.b16 %v1690
        %v1771 = vunpack.c.l.b16 %v1691
        %v1772 = vunpack.c.l.b16 %v1692
        %v1773 = vunpack.c.l.b16 %v1693
        %v1774 = vunpack.c.l.b16 %v1694
        %v1775 = vunpack.c.l.b16 %v1695
        %v1776 = vunpack.c.l.b16 %v1696
        %v1777 = vunpack.c.l.b16 %v1697
        %v1778 = vunpack.c.l.b16 %v1698
        %v1779 = vunpack.c.l.b16 %v1699
        %v1780 = vunpack.c.l.b16 %v1700
        %v1781 = vunpack.c.l.b16 %v1701
        %v1782 = vunpack.c.l.b16 %v1702
        %v1783 = vpack.c.b16 %v1768, %v1767
        %v1784 = vpack.c.b16 %v1770, %v1769
        %v1785 = vpack.c.b16 %v1772, %v1771
        %v1786 = vpack.c.b16 %v1774, %v1773
        %v1787 = vpack.c.b16 %v1776, %v1775
        %v1788 = vpack.c.b16 %v1778, %v1777
        %v1789 = vpack.c.b16 %v1780, %v1779
        %v1790 = vpack.c.b16 %v1782, %v1781
        %1799 = vmatpush.bf16.msra.mxu0 %v554
        %1800 = vmatpush.bf16.msra.mxu0 %v553
        %1801 = vmatpush.bf16.msra.mxu0 %v552
        %1802 = vmatpush.bf16.msra.mxu0 %v551
        %1803 = vmatpush.bf16.msra.mxu0 %v550
        %1804 = vmatpush.bf16.msra.mxu0 %v549
        %1805 = vmatpush.bf16.msra.mxu0 %v548
        %1806 = vmatpush.bf16.msra.mxu0 %v547
        %1807 = vmatmul.bf16.gmra.mxu0 %v1783
        %v1808 = vpop.f32.mrf.mxu0
        %v1809 = vadd.f32 0.0, %v1808
        %v1810 = vpop.f32.mrf.mxu0
        %v1811 = vadd.f32 0.0, %v1810
        %1812 = vmatmul.bf16.gmra.mxu0 %v1784
        %v1813 = vpop.f32.mrf.mxu0
        %v1814 = vadd.f32 0.0, %v1813
        %v1815 = vpop.f32.mrf.mxu0
        %v1816 = vadd.f32 0.0, %v1815
        %1817 = vmatmul.bf16.gmra.mxu0 %v1785
        %v1818 = vpop.f32.mrf.mxu0
        %v1819 = vadd.f32 0.0, %v1818
        %v1820 = vpop.f32.mrf.mxu0
        %v1821 = vadd.f32 0.0, %v1820
        %1822 = vmatmul.bf16.gmra.mxu0 %v1786
        %v1823 = vpop.f32.mrf.mxu0
        %v1824 = vadd.f32 0.0, %v1823
        %v1825 = vpop.f32.mrf.mxu0
        %v1826 = vadd.f32 0.0, %v1825
        %1827 = vmatmul.bf16.gmra.mxu0 %v1787
        %v1828 = vpop.f32.mrf.mxu0
        %v1829 = vadd.f32 0.0, %v1828
        %v1830 = vpop.f32.mrf.mxu0
        %v1831 = vadd.f32 0.0, %v1830
        %1832 = vmatmul.bf16.gmra.mxu0 %v1788
        %v1833 = vpop.f32.mrf.mxu0
        %v1834 = vadd.f32 0.0, %v1833
        %v1835 = vpop.f32.mrf.mxu0
        %v1836 = vadd.f32 0.0, %v1835
        %1837 = vmatmul.bf16.gmra.mxu0 %v1789
        %v1838 = vpop.f32.mrf.mxu0
        %v1839 = vadd.f32 0.0, %v1838
        %v1840 = vpop.f32.mrf.mxu0
        %v1841 = vadd.f32 0.0, %v1840
        %1842 = vmatmul.bf16.gmra.mxu0 %v1790
        %v1843 = vpop.f32.mrf.mxu0
        %v1844 = vadd.f32 0.0, %v1843
        %v1845 = vpop.f32.mrf.mxu0
        %v1846 = vadd.f32 0.0, %v1845
        %1847 = vdwg.mxu0
        %v1864 = vunpack.c.l.b16 %v1703
        %v1865 = vunpack.c.l.b16 %v1704
        %v1866 = vunpack.c.l.b16 %v1705
        %v1867 = vunpack.c.l.b16 %v1706
        %v1868 = vunpack.c.l.b16 %v1707
        %v1869 = vunpack.c.l.b16 %v1708
        %v1870 = vunpack.c.l.b16 %v1709
        %v1871 = vunpack.c.l.b16 %v1710
        %v1872 = vunpack.c.l.b16 %v1711
        %v1873 = vunpack.c.l.b16 %v1712
        %v1874 = vunpack.c.l.b16 %v1713
        %v1875 = vunpack.c.l.b16 %v1714
        %v1876 = vunpack.c.l.b16 %v1715
        %v1877 = vunpack.c.l.b16 %v1716
        %v1878 = vunpack.c.l.b16 %v1717
        %v1879 = vunpack.c.l.b16 %v1718
        %v1880 = vpack.c.b16 %v1865, %v1864
        %v1881 = vpack.c.b16 %v1867, %v1866
        %v1882 = vpack.c.b16 %v1869, %v1868
        %v1883 = vpack.c.b16 %v1871, %v1870
        %v1884 = vpack.c.b16 %v1873, %v1872
        %v1885 = vpack.c.b16 %v1875, %v1874
        %v1886 = vpack.c.b16 %v1877, %v1876
        %v1887 = vpack.c.b16 %v1879, %v1878
        %1896 = vmatpush.bf16.msra.mxu0 %v699
        %1897 = vmatpush.bf16.msra.mxu0 %v698
        %1898 = vmatpush.bf16.msra.mxu0 %v697
        %1899 = vmatpush.bf16.msra.mxu0 %v696
        %1900 = vmatpush.bf16.msra.mxu0 %v695
        %1901 = vmatpush.bf16.msra.mxu0 %v694
        %1902 = vmatpush.bf16.msra.mxu0 %v693
        %1903 = vmatpush.bf16.msra.mxu0 %v692
        %1904 = vmatmul.bf16.gmra.mxu0 %v1880
        %v1905 = vpop.f32.mrf.mxu0
        %v1906 = vadd.f32 0.0, %v1905
        %v1907 = vpop.f32.mrf.mxu0
        %v1908 = vadd.f32 0.0, %v1907
        %1909 = vmatmul.bf16.gmra.mxu0 %v1881
        %v1910 = vpop.f32.mrf.mxu0
        %v1911 = vadd.f32 0.0, %v1910
        %v1912 = vpop.f32.mrf.mxu0
        %v1913 = vadd.f32 0.0, %v1912
        %1914 = vmatmul.bf16.gmra.mxu0 %v1882
        %v1915 = vpop.f32.mrf.mxu0
        %v1916 = vadd.f32 0.0, %v1915
        %v1917 = vpop.f32.mrf.mxu0
        %v1918 = vadd.f32 0.0, %v1917
        %1919 = vmatmul.bf16.gmra.mxu0 %v1883
        %v1920 = vpop.f32.mrf.mxu0
        %v1921 = vadd.f32 0.0, %v1920
        %v1922 = vpop.f32.mrf.mxu0
        %v1923 = vadd.f32 0.0, %v1922
        %1924 = vmatmul.bf16.gmra.mxu0 %v1884
        %v1925 = vpop.f32.mrf.mxu0
        %v1926 = vadd.f32 0.0, %v1925
        %v1927 = vpop.f32.mrf.mxu0
        %v1928 = vadd.f32 0.0, %v1927
        %1929 = vmatmul.bf16.gmra.mxu0 %v1885
        %v1930 = vpop.f32.mrf.mxu0
        %v1931 = vadd.f32 0.0, %v1930
        %v1932 = vpop.f32.mrf.mxu0
        %v1933 = vadd.f32 0.0, %v1932
        %1934 = vmatmul.bf16.gmra.mxu0 %v1886
        %v1935 = vpop.f32.mrf.mxu0
        %v1936 = vadd.f32 0.0, %v1935
        %v1937 = vpop.f32.mrf.mxu0
        %v1938 = vadd.f32 0.0, %v1937
        %1939 = vmatmul.bf16.gmra.mxu0 %v1887
        %v1940 = vpop.f32.mrf.mxu0
        %v1941 = vadd.f32 0.0, %v1940
        %v1942 = vpop.f32.mrf.mxu0
        %v1943 = vadd.f32 0.0, %v1942
        %1944 = vdwg.mxu0
        %v1961 = vunpack.c.l.b16 %v1719
        %v1962 = vunpack.c.l.b16 %v1720
        %v1963 = vunpack.c.l.b16 %v1721
        %v1964 = vunpack.c.l.b16 %v1722
        %v1965 = vunpack.c.l.b16 %v1723
        %v1966 = vunpack.c.l.b16 %v1724
        %v1967 = vunpack.c.l.b16 %v1725
        %v1968 = vunpack.c.l.b16 %v1726
        %v1969 = vunpack.c.l.b16 %v1727
        %v1970 = vunpack.c.l.b16 %v1728
        %v1971 = vunpack.c.l.b16 %v1729
        %v1972 = vunpack.c.l.b16 %v1730
        %v1973 = vunpack.c.l.b16 %v1731
        %v1974 = vunpack.c.l.b16 %v1732
        %v1975 = vunpack.c.l.b16 %v1733
        %v1976 = vunpack.c.l.b16 %v1734
        %v1977 = vpack.c.b16 %v1962, %v1961
        %v1978 = vpack.c.b16 %v1964, %v1963
        %v1979 = vpack.c.b16 %v1966, %v1965
        %v1980 = vpack.c.b16 %v1968, %v1967
        %v1981 = vpack.c.b16 %v1970, %v1969
        %v1982 = vpack.c.b16 %v1972, %v1971
        %v1983 = vpack.c.b16 %v1974, %v1973
        %v1984 = vpack.c.b16 %v1976, %v1975
        %1993 = vmatpush.bf16.msra.mxu0 %v844
        %1994 = vmatpush.bf16.msra.mxu0 %v843
        %1995 = vmatpush.bf16.msra.mxu0 %v842
        %1996 = vmatpush.bf16.msra.mxu0 %v841
        %1997 = vmatpush.bf16.msra.mxu0 %v840
        %1998 = vmatpush.bf16.msra.mxu0 %v839
        %1999 = vmatpush.bf16.msra.mxu0 %v838
        %2000 = vmatpush.bf16.msra.mxu0 %v837
        %2001 = vmatmul.bf16.gmra.mxu0 %v1977
        %v2002 = vpop.f32.mrf.mxu0
        %v2003 = vadd.f32 0.0, %v2002
        %v2004 = vpop.f32.mrf.mxu0
        %v2005 = vadd.f32 0.0, %v2004
        %2006 = vmatmul.bf16.gmra.mxu0 %v1978
        %v2007 = vpop.f32.mrf.mxu0
        %v2008 = vadd.f32 0.0, %v2007
        %v2009 = vpop.f32.mrf.mxu0
        %v2010 = vadd.f32 0.0, %v2009
        %2011 = vmatmul.bf16.gmra.mxu0 %v1979
        %v2012 = vpop.f32.mrf.mxu0
        %v2013 = vadd.f32 0.0, %v2012
        %v2014 = vpop.f32.mrf.mxu0
        %v2015 = vadd.f32 0.0, %v2014
        %2016 = vmatmul.bf16.gmra.mxu0 %v1980
        %v2017 = vpop.f32.mrf.mxu0
        %v2018 = vadd.f32 0.0, %v2017
        %v2019 = vpop.f32.mrf.mxu0
        %v2020 = vadd.f32 0.0, %v2019
        %2021 = vmatmul.bf16.gmra.mxu0 %v1981
        %v2022 = vpop.f32.mrf.mxu0
        %v2023 = vadd.f32 0.0, %v2022
        %v2024 = vpop.f32.mrf.mxu0
        %v2025 = vadd.f32 0.0, %v2024
        %2026 = vmatmul.bf16.gmra.mxu0 %v1982
        %v2027 = vpop.f32.mrf.mxu0
        %v2028 = vadd.f32 0.0, %v2027
        %v2029 = vpop.f32.mrf.mxu0
        %v2030 = vadd.f32 0.0, %v2029
        %2031 = vmatmul.bf16.gmra.mxu0 %v1983
        %v2032 = vpop.f32.mrf.mxu0
        %v2033 = vadd.f32 0.0, %v2032
        %v2034 = vpop.f32.mrf.mxu0
        %v2035 = vadd.f32 0.0, %v2034
        %2036 = vmatmul.bf16.gmra.mxu0 %v1984
        %v2037 = vpop.f32.mrf.mxu0
        %v2038 = vadd.f32 0.0, %v2037
        %v2039 = vpop.f32.mrf.mxu0
        %v2040 = vadd.f32 0.0, %v2039
        %2041 = vdwg.mxu0
        %v2058 = vunpack.c.l.b16 %v1735
        %v2059 = vunpack.c.l.b16 %v1736
        %v2060 = vunpack.c.l.b16 %v1737
        %v2061 = vunpack.c.l.b16 %v1738
        %v2062 = vunpack.c.l.b16 %v1739
        %v2063 = vunpack.c.l.b16 %v1740
        %v2064 = vunpack.c.l.b16 %v1741
        %v2065 = vunpack.c.l.b16 %v1742
        %v2066 = vunpack.c.l.b16 %v1743
        %v2067 = vunpack.c.l.b16 %v1744
        %v2068 = vunpack.c.l.b16 %v1745
        %v2069 = vunpack.c.l.b16 %v1746
        %v2070 = vunpack.c.l.b16 %v1747
        %v2071 = vunpack.c.l.b16 %v1748
        %v2072 = vunpack.c.l.b16 %v1749
        %v2073 = vunpack.c.l.b16 %v1750
        %v2074 = vpack.c.b16 %v2059, %v2058
        %v2075 = vpack.c.b16 %v2061, %v2060
        %v2076 = vpack.c.b16 %v2063, %v2062
        %v2077 = vpack.c.b16 %v2065, %v2064
        %v2078 = vpack.c.b16 %v2067, %v2066
        %v2079 = vpack.c.b16 %v2069, %v2068
        %v2080 = vpack.c.b16 %v2071, %v2070
        %v2081 = vpack.c.b16 %v2073, %v2072
        %2090 = vmatpush.bf16.msra.mxu0 %v989
        %2091 = vmatpush.bf16.msra.mxu0 %v988
        %2092 = vmatpush.bf16.msra.mxu0 %v987
        %2093 = vmatpush.bf16.msra.mxu0 %v986
        %2094 = vmatpush.bf16.msra.mxu0 %v985
        %2095 = vmatpush.bf16.msra.mxu0 %v984
        %2096 = vmatpush.bf16.msra.mxu0 %v983
        %2097 = vmatpush.bf16.msra.mxu0 %v982
        %2098 = vmatmul.bf16.gmra.mxu0 %v2074
        %v2099 = vpop.f32.mrf.mxu0
        %v2100 = vadd.f32 0.0, %v2099
        %v2101 = vpop.f32.mrf.mxu0
        %v2102 = vadd.f32 0.0, %v2101
        %2103 = vmatmul.bf16.gmra.mxu0 %v2075
        %v2104 = vpop.f32.mrf.mxu0
        %v2105 = vadd.f32 0.0, %v2104
        %v2106 = vpop.f32.mrf.mxu0
        %v2107 = vadd.f32 0.0, %v2106
        %2108 = vmatmul.bf16.gmra.mxu0 %v2076
        %v2109 = vpop.f32.mrf.mxu0
        %v2110 = vadd.f32 0.0, %v2109
        %v2111 = vpop.f32.mrf.mxu0
        %v2112 = vadd.f32 0.0, %v2111
        %2113 = vmatmul.bf16.gmra.mxu0 %v2077
        %v2114 = vpop.f32.mrf.mxu0
        %v2115 = vadd.f32 0.0, %v2114
        %v2116 = vpop.f32.mrf.mxu0
        %v2117 = vadd.f32 0.0, %v2116
        %2118 = vmatmul.bf16.gmra.mxu0 %v2078
        %v2119 = vpop.f32.mrf.mxu0
        %v2120 = vadd.f32 0.0, %v2119
        %v2121 = vpop.f32.mrf.mxu0
        %v2122 = vadd.f32 0.0, %v2121
        %2123 = vmatmul.bf16.gmra.mxu0 %v2079
        %v2124 = vpop.f32.mrf.mxu0
        %v2125 = vadd.f32 0.0, %v2124
        %v2126 = vpop.f32.mrf.mxu0
        %v2127 = vadd.f32 0.0, %v2126
        %2128 = vmatmul.bf16.gmra.mxu0 %v2080
        %v2129 = vpop.f32.mrf.mxu0
        %v2130 = vadd.f32 0.0, %v2129
        %v2131 = vpop.f32.mrf.mxu0
        %v2132 = vadd.f32 0.0, %v2131
        %2133 = vmatmul.bf16.gmra.mxu0 %v2081
        %v2134 = vpop.f32.mrf.mxu0
        %v2135 = vadd.f32 0.0, %v2134
        %v2136 = vpop.f32.mrf.mxu0
        %v2137 = vadd.f32 0.0, %v2136
        %2138 = vdwg.mxu0
        %v2139 = vrcp.pop %v1368
        %v2140 = vrcp.pop %v1370
        %v2141 = vrcp.pop %v1372
        %v2142 = vrcp.pop %v1374
        %v2143 = vrcp.pop %v1376
        %v2144 = vrcp.pop %v1378
        %v2145 = vrcp.pop %v1380
        %v2146 = vrcp.pop %v1382
        %v2147 = vrcp.pop %v1384
        %v2148 = vrcp.pop %v1386
        %v2149 = vrcp.pop %v1388
        %v2150 = vrcp.pop %v1390
        %v2151 = vrcp.pop %v1392
        %v2152 = vrcp.pop %v1394
        %v2153 = vrcp.pop %v1396
        %v2154 = vrcp.pop %v1398
        %v2155 = vrcp.pop %v1400
        %v2156 = vrcp.pop %v1402
        %v2157 = vrcp.pop %v1404
        %v2158 = vrcp.pop %v1406
        %v2159 = vrcp.pop %v1408
        %v2160 = vrcp.pop %v1410
        %v2161 = vrcp.pop %v1412
        %v2162 = vrcp.pop %v1414
        %v2163 = vrcp.pop %v1416
        %v2164 = vrcp.pop %v1418
        %v2165 = vrcp.pop %v1420
        %v2166 = vrcp.pop %v1422
        %v2167 = vrcp.pop %v1424
        %v2168 = vrcp.pop %v1426
        %v2169 = vrcp.pop %v1428
        %v2170 = vrcp.pop %v1430
        %v2171 = vrcp.pop %v1432
        %v2172 = vrcp.pop %v1434
        %v2173 = vrcp.pop %v1436
        %v2174 = vrcp.pop %v1438
        %v2175 = vrcp.pop %v1440
        %v2176 = vrcp.pop %v1442
        %v2177 = vrcp.pop %v1444
        %v2178 = vrcp.pop %v1446
        %v2179 = vrcp.pop %v1448
        %v2180 = vrcp.pop %v1450
        %v2181 = vrcp.pop %v1452
        %v2182 = vrcp.pop %v1454
        %v2183 = vrcp.pop %v1456
        %v2184 = vrcp.pop %v1458
        %v2185 = vrcp.pop %v1460
        %v2186 = vrcp.pop %v1462
        %v2187 = vrcp.pop %v1464
        %v2188 = vrcp.pop %v1466
        %v2189 = vrcp.pop %v1468
        %v2190 = vrcp.pop %v1470
        %v2191 = vrcp.pop %v1472
        %v2192 = vrcp.pop %v1474
        %v2193 = vrcp.pop %v1476
        %v2194 = vrcp.pop %v1478
        %v2195 = vrcp.pop %v1480
        %v2196 = vrcp.pop %v1482
        %v2197 = vrcp.pop %v1484
        %v2198 = vrcp.pop %v1486
        %v2199 = vrcp.pop %v1488
        %v2200 = vrcp.pop %v1490
        %v2201 = vrcp.pop %v1492
        %v2202 = vrcp.pop %v1494
        %v2203 = vmul.f32 %v2139, 2.0
        %v2204 = vmul.f32 %v2140, 2.0
        %v2205 = vmul.f32 %v2141, 2.0
        %v2206 = vmul.f32 %v2142, 2.0
        %v2207 = vmul.f32 %v2143, 2.0
        %v2208 = vmul.f32 %v2144, 2.0
        %v2209 = vmul.f32 %v2145, 2.0
        %v2210 = vmul.f32 %v2146, 2.0
        %v2211 = vmul.f32 %v2147, 2.0
        %v2212 = vmul.f32 %v2148, 2.0
        %v2213 = vmul.f32 %v2149, 2.0
        %v2214 = vmul.f32 %v2150, 2.0
        %v2215 = vmul.f32 %v2151, 2.0
        %v2216 = vmul.f32 %v2152, 2.0
        %v2217 = vmul.f32 %v2153, 2.0
        %v2218 = vmul.f32 %v2154, 2.0
        %v2219 = vmul.f32 %v2155, 2.0
        %v2220 = vmul.f32 %v2156, 2.0
        %v2221 = vmul.f32 %v2157, 2.0
        %v2222 = vmul.f32 %v2158, 2.0
        %v2223 = vmul.f32 %v2159, 2.0
        %v2224 = vmul.f32 %v2160, 2.0
        %v2225 = vmul.f32 %v2161, 2.0
        %v2226 = vmul.f32 %v2162, 2.0
        %v2227 = vmul.f32 %v2163, 2.0
        %v2228 = vmul.f32 %v2164, 2.0
        %v2229 = vmul.f32 %v2165, 2.0
        %v2230 = vmul.f32 %v2166, 2.0
        %v2231 = vmul.f32 %v2167, 2.0
        %v2232 = vmul.f32 %v2168, 2.0
        %v2233 = vmul.f32 %v2169, 2.0
        %v2234 = vmul.f32 %v2170, 2.0
        %v2235 = vmul.f32 %v2171, 2.0
        %v2236 = vmul.f32 %v2172, 2.0
        %v2237 = vmul.f32 %v2173, 2.0
        %v2238 = vmul.f32 %v2174, 2.0
        %v2239 = vmul.f32 %v2175, 2.0
        %v2240 = vmul.f32 %v2176, 2.0
        %v2241 = vmul.f32 %v2177, 2.0
        %v2242 = vmul.f32 %v2178, 2.0
        %v2243 = vmul.f32 %v2179, 2.0
        %v2244 = vmul.f32 %v2180, 2.0
        %v2245 = vmul.f32 %v2181, 2.0
        %v2246 = vmul.f32 %v2182, 2.0
        %v2247 = vmul.f32 %v2183, 2.0
        %v2248 = vmul.f32 %v2184, 2.0
        %v2249 = vmul.f32 %v2185, 2.0
        %v2250 = vmul.f32 %v2186, 2.0
        %v2251 = vmul.f32 %v2187, 2.0
        %v2252 = vmul.f32 %v2188, 2.0
        %v2253 = vmul.f32 %v2189, 2.0
        %v2254 = vmul.f32 %v2190, 2.0
        %v2255 = vmul.f32 %v2191, 2.0
        %v2256 = vmul.f32 %v2192, 2.0
        %v2257 = vmul.f32 %v2193, 2.0
        %v2258 = vmul.f32 %v2194, 2.0
        %v2259 = vmul.f32 %v2195, 2.0
        %v2260 = vmul.f32 %v2196, 2.0
        %v2261 = vmul.f32 %v2197, 2.0
        %v2262 = vmul.f32 %v2198, 2.0
        %v2263 = vmul.f32 %v2199, 2.0
        %v2264 = vmul.f32 %v2200, 2.0
        %v2265 = vmul.f32 %v2201, 2.0
        %v2266 = vmul.f32 %v2202, 2.0
        %v2267 = vmul.f32 %v1809, %v2203
        %v2268 = vmul.f32 %v1811, %v2204
        %v2269 = vmul.f32 %v1814, %v2205
        %v2270 = vmul.f32 %v1816, %v2206
        %v2271 = vmul.f32 %v1819, %v2207
        %v2272 = vmul.f32 %v1821, %v2208
        %v2273 = vmul.f32 %v1824, %v2209
        %v2274 = vmul.f32 %v1826, %v2210
        %v2275 = vmul.f32 %v1829, %v2211
        %v2276 = vmul.f32 %v1831, %v2212
        %v2277 = vmul.f32 %v1834, %v2213
        %v2278 = vmul.f32 %v1836, %v2214
        %v2279 = vmul.f32 %v1839, %v2215
        %v2280 = vmul.f32 %v1841, %v2216
        %v2281 = vmul.f32 %v1844, %v2217
        %v2282 = vmul.f32 %v1846, %v2218
        %v2283 = vmul.f32 %v1906, %v2219
        %v2284 = vmul.f32 %v1908, %v2220
        %v2285 = vmul.f32 %v1911, %v2221
        %v2286 = vmul.f32 %v1913, %v2222
        %v2287 = vmul.f32 %v1916, %v2223
        %v2288 = vmul.f32 %v1918, %v2224
        %v2289 = vmul.f32 %v1921, %v2225
        %v2290 = vmul.f32 %v1923, %v2226
        %v2291 = vmul.f32 %v1926, %v2227
        %v2292 = vmul.f32 %v1928, %v2228
        %v2293 = vmul.f32 %v1931, %v2229
        %v2294 = vmul.f32 %v1933, %v2230
        %v2295 = vmul.f32 %v1936, %v2231
        %v2296 = vmul.f32 %v1938, %v2232
        %v2297 = vmul.f32 %v1941, %v2233
        %v2298 = vmul.f32 %v1943, %v2234
        %v2299 = vmul.f32 %v2003, %v2235
        %v2300 = vmul.f32 %v2005, %v2236
        %v2301 = vmul.f32 %v2008, %v2237
        %v2302 = vmul.f32 %v2010, %v2238
        %v2303 = vmul.f32 %v2013, %v2239
        %v2304 = vmul.f32 %v2015, %v2240
        %v2305 = vmul.f32 %v2018, %v2241
        %v2306 = vmul.f32 %v2020, %v2242
        %v2307 = vmul.f32 %v2023, %v2243
        %v2308 = vmul.f32 %v2025, %v2244
        %v2309 = vmul.f32 %v2028, %v2245
        %v2310 = vmul.f32 %v2030, %v2246
        %v2311 = vmul.f32 %v2033, %v2247
        %v2312 = vmul.f32 %v2035, %v2248
        %v2313 = vmul.f32 %v2038, %v2249
        %v2314 = vmul.f32 %v2040, %v2250
        %v2315 = vmul.f32 %v2100, %v2251
        %v2316 = vmul.f32 %v2102, %v2252
        %v2317 = vmul.f32 %v2105, %v2253
        %v2318 = vmul.f32 %v2107, %v2254
        %v2319 = vmul.f32 %v2110, %v2255
        %v2320 = vmul.f32 %v2112, %v2256
        %v2321 = vmul.f32 %v2115, %v2257
        %v2322 = vmul.f32 %v2117, %v2258
        %v2323 = vmul.f32 %v2120, %v2259
        %v2324 = vmul.f32 %v2122, %v2260
        %v2325 = vmul.f32 %v2125, %v2261
        %v2326 = vmul.f32 %v2127, %v2262
        %v2327 = vmul.f32 %v2130, %v2263
        %v2328 = vmul.f32 %v2132, %v2264
        %v2329 = vmul.f32 %v2135, %v2265
        %v2330 = vmul.f32 %v2137, %v2266
        %2331 = vst [vmem:[%s207] sm:$0xff] %v2267
        %2332 = vst [vmem:[%s207 + $0x8] sm:$0xff] %v2268
        %2333 = vst [vmem:[%s207 + $0x10] sm:$0xff] %v2269
        %2334 = vst [vmem:[%s207 + $0x18] sm:$0xff] %v2270
        %2335 = vst [vmem:[%s207 + $0x20] sm:$0xff] %v2271
        %2336 = vst [vmem:[%s207 + $0x28] sm:$0xff] %v2272
        %2337 = vst [vmem:[%s207 + $0x30] sm:$0xff] %v2273
        %2338 = vst [vmem:[%s207 + $0x38] sm:$0xff] %v2274
        %2339 = vst [vmem:[%s207 + $0x40] sm:$0xff] %v2275
        %2340 = vst [vmem:[%s207 + $0x48] sm:$0xff] %v2276
        %2341 = vst [vmem:[%s207 + $0x50] sm:$0xff] %v2277
        %2342 = vst [vmem:[%s207 + $0x58] sm:$0xff] %v2278
        %2343 = vst [vmem:[%s207 + $0x60] sm:$0xff] %v2279
        %2344 = vst [vmem:[%s207 + $0x68] sm:$0xff] %v2280
        %2345 = vst [vmem:[%s207 + $0x70] sm:$0xff] %v2281
        %2346 = vst [vmem:[%s207 + $0x78] sm:$0xff] %v2282
        %2347 = vst [vmem:[%s207 + $0x80] sm:$0xff] %v2283
        %2348 = vst [vmem:[%s207 + $0x88] sm:$0xff] %v2284
        %2349 = vst [vmem:[%s207 + $0x90] sm:$0xff] %v2285
        %2350 = vst [vmem:[%s207 + $0x98] sm:$0xff] %v2286
        %2351 = vst [vmem:[%s207 + $0xa0] sm:$0xff] %v2287
        %2352 = vst [vmem:[%s207 + $0xa8] sm:$0xff] %v2288
        %2353 = vst [vmem:[%s207 + $0xb0] sm:$0xff] %v2289
        %2354 = vst [vmem:[%s207 + $0xb8] sm:$0xff] %v2290
        %2355 = vst [vmem:[%s207 + $0xc0] sm:$0xff] %v2291
        %2356 = vst [vmem:[%s207 + $0xc8] sm:$0xff] %v2292
        %2357 = vst [vmem:[%s207 + $0xd0] sm:$0xff] %v2293
        %2358 = vst [vmem:[%s207 + $0xd8] sm:$0xff] %v2294
        %2359 = vst [vmem:[%s207 + $0xe0] sm:$0xff] %v2295
        %2360 = vst [vmem:[%s207 + $0xe8] sm:$0xff] %v2296
        %2361 = vst [vmem:[%s207 + $0xf0] sm:$0xff] %v2297
        %2362 = vst [vmem:[%s207 + $0xf8] sm:$0xff] %v2298
        %2363 = vst [vmem:[%s207 + $0x100] sm:$0xff] %v2299
        %2364 = vst [vmem:[%s207 + $0x108] sm:$0xff] %v2300
        %2365 = vst [vmem:[%s207 + $0x110] sm:$0xff] %v2301
        %2366 = vst [vmem:[%s207 + $0x118] sm:$0xff] %v2302
        %2367 = vst [vmem:[%s207 + $0x120] sm:$0xff] %v2303
        %2368 = vst [vmem:[%s207 + $0x128] sm:$0xff] %v2304
        %2369 = vst [vmem:[%s207 + $0x130] sm:$0xff] %v2305
        %2370 = vst [vmem:[%s207 + $0x138] sm:$0xff] %v2306
        %2371 = vst [vmem:[%s207 + $0x140] sm:$0xff] %v2307
        %2372 = vst [vmem:[%s207 + $0x148] sm:$0xff] %v2308
        %2373 = vst [vmem:[%s207 + $0x150] sm:$0xff] %v2309
        %2374 = vst [vmem:[%s207 + $0x158] sm:$0xff] %v2310
        %2375 = vst [vmem:[%s207 + $0x160] sm:$0xff] %v2311
        %2376 = vst [vmem:[%s207 + $0x168] sm:$0xff] %v2312
        %2377 = vst [vmem:[%s207 + $0x170] sm:$0xff] %v2313
        %2378 = vst [vmem:[%s207 + $0x178] sm:$0xff] %v2314
        %2379 = vst [vmem:[%s207 + $0x180] sm:$0xff] %v2315
        %2380 = vst [vmem:[%s207 + $0x188] sm:$0xff] %v2316
        %2381 = vst [vmem:[%s207 + $0x190] sm:$0xff] %v2317
        %2382 = vst [vmem:[%s207 + $0x198] sm:$0xff] %v2318
        %2383 = vst [vmem:[%s207 + $0x1a0] sm:$0xff] %v2319
        %2384 = vst [vmem:[%s207 + $0x1a8] sm:$0xff] %v2320
        %2385 = vst [vmem:[%s207 + $0x1b0] sm:$0xff] %v2321
        %2386 = vst [vmem:[%s207 + $0x1b8] sm:$0xff] %v2322
        %2387 = vst [vmem:[%s207 + $0x1c0] sm:$0xff] %v2323
        %2388 = vst [vmem:[%s207 + $0x1c8] sm:$0xff] %v2324
        %2389 = vst [vmem:[%s207 + $0x1d0] sm:$0xff] %v2325
        %2390 = vst [vmem:[%s207 + $0x1d8] sm:$0xff] %v2326
        %2391 = vst [vmem:[%s207 + $0x1e0] sm:$0xff] %v2327
        %2392 = vst [vmem:[%s207 + $0x1e8] sm:$0xff] %v2328
        %2393 = vst [vmem:[%s207 + $0x1f0] sm:$0xff] %v2329
        %2394 = vst [vmem:[%s207 + $0x1f8] sm:$0xff] %v2330
        %s2395 = sand.u32 %s82, 1
        %s2396 = scalar_lea.sflag [#allocation4], %s2395
        %s2397 = sand.u32 %s82, 1
        %s2398 = smul.addr %s2397, 512
        %s2399 = scalar_lea.vmem [#allocation7], %s2398
        // Predicated region
        $region37: #{tpu_custom_call.1} parent=27 // pred_check
          %p2400 = pneg %p92
        $region38: #{tpu_custom_call.1} parent=27 // pred_check_branch
          %2402 = sbr.rel (%p2400) target = $region40
        $region39: #{tpu_custom_call.1} parent=27 // pred_region
          %s2403 = smul.u32 4, %s22
          %2405 = vsyncadd %s2396, 0
          %s2406 = smul.addr %s2403, 16
          %s2407 = smul.addr %s2406, 8
          %s2408 = scalar_lea.hbm %s2, %s2407
          %s2409 = sshll.u32 %s2399, 4
          %s2410 = int_to_ptr.vmem [resolvable:$true] %s2409
          %s2411 = sshll.u32 %s2408, 4
          %s2412 = int_to_ptr.hbm [resolvable:$true] %s2411
          %2417 = dma.vmem_to_hbm [thread:$0]  %s2410, 8192, %s2412, %s2396, 128, 128, 8
        $region40: #{tpu_custom_call.1} parent=27 // pred_fallthru
          _
      $region28: #{tpu_custom_call.1} parent=5 // pred_fallthru
        _
      %p2418 = scmp.le.s32.totalorder 2, %s17
      // Predicated region
      $region41: #{tpu_custom_call.1} parent=5 // pred_check
        %p2419 = pneg %p2418
      $region42: #{tpu_custom_call.1} parent=5 // pred_check_branch
        %2421 = sbr.rel (%p2419) target = $region44
      $region43: #{tpu_custom_call.1} parent=5 // pred_region
        %s2422 = ssub.s32 %s17, 2
        // Predicated region
        $region45: #{tpu_custom_call.1} parent=43 // pred_check
          %p2423 = pneg %p98
        $region46: #{tpu_custom_call.1} parent=43 // pred_check_branch
          %2425 = sbr.rel (%p2423) target = $region48
        $region47: #{tpu_custom_call.1} parent=43 // pred_region
          %s2426 = sand.u32 %s83, 1
          %s2427 = scalar_lea.sflag [#allocation4], %s2426
          %s2428 = sand.u32 %s83, 1
          %s2429 = smul.addr %s2428, 512
          %s2430 = scalar_lea.vmem [#allocation7], %s2429
          %2432 = dma.done %s2427, 8192
        $region48: #{tpu_custom_call.1} parent=43 // pred_fallthru
          _
      $region44: #{tpu_custom_call.1} parent=5 // pred_fallthru
        _
    $region6: #{tpu_custom_call.1} parent=1 // loop_footer
      %s21 = sadd.s32 1, %s17
    $region7: #{tpu_custom_call.1} parent=1 // loop_footer_branch
      %16 = sbr.rel target = $region3
    $region8: #{tpu_custom_call.1} parent=1 // loop_exit
      _
    %2433 = vsyncpa [#allocation3], 1
    %s2434 = scalar_lea.sflag [#allocation3], 1
    %2435 = vsyncpa %s2434, 1
    %2436 = vsyncpa [#allocation6], 1
    %s2437 = scalar_lea.sflag [#allocation6], 1
    %2438 = vsyncpa %s2437, 1
    %2439 = vsyncpa [#allocation4], 1
    %s2440 = scalar_lea.sflag [#allocation4], 1
    %2441 = vsyncpa %s2440, 1

</llo_original>
